<compile_context>
chip_gen: v6e
topology: v6e:2x2x1
jax: 0.10.0
libtpu: 0.0.40
codegen_flags: <defaults>
</compile_context>

<pallas_src>
import functools

import jax
import jax.numpy as jnp
from jax.experimental import pallas as pl
from jax.experimental.pallas import tpu as pltpu

DIM = 32          # embedding dim
NUM_HEADS = 4     # attention heads
HEAD_DIM = DIM // NUM_HEADS
LOCAL_QUERY_RATIO = 0.3
LN_EPS = 1e-5     # PyTorch nn.LayerNorm default eps


# ----------------------------------------------------------------------------
# Pallas kernel: one batch element per grid step.
#   LayerNorm(x_b) -> pl.ds gather of the Nq local-query rows (indices in
#   SMEM) -> merged-head Q / K / V projections (bf16 MXU operands, f32
#   accumulation, softmax scale pre-folded into Wq) -> per-head softmax
#   cross-attention -> merged-head output projection -> in-block scatter of
#   the updated rows (iota/where blend) -> single full-block store.
# ----------------------------------------------------------------------------
def _glca_kernel(sel_ref, x_ref, gamma_ref, beta_ref, wq_ref, wk_ref, wv_ref,
                 wo_ref, bo_ref, out_ref, *, num_heads, head_dim, num_sel):
    t, _ = x_ref.shape                 # [T, C] (batch dim squeezed by BlockSpec)
    b = pl.program_id(0)
    h, d, nq = num_heads, head_dim, num_sel

    x = x_ref[...].astype(jnp.float32)                       # [T, C]
    gamma = gamma_ref[...]                                    # [1, C]
    beta = beta_ref[...]                                      # [1, C]

    def layernorm(v):
        mu = jnp.mean(v, axis=-1, keepdims=True)
        var = jnp.mean(jnp.square(v - mu), axis=-1, keepdims=True)
        return (v - mu) * jax.lax.rsqrt(var + LN_EPS) * gamma + beta

    xn = layernorm(x)                                         # keys / values

    # Gather the Nq local-query rows via dynamic sublane loads; the indices
    # are scalar-prefetched into SMEM.  LayerNorm is row-wise, so normalizing
    # the gathered rows == gathering the normalized rows.
    q_raw = jnp.concatenate(
        [x_ref[pl.ds(sel_ref[b, i], 1), :].astype(jnp.float32)
         for i in range(nq)], axis=0)                         # [Nq, C]
    qn = layernorm(q_raw)

    xb = xn.astype(jnp.bfloat16)
    qb = qn.astype(jnp.bfloat16)

    # Merged-head projections: 2-D matmuls of depth / width C = H*D.
    # (1/sqrt(head_dim) is already folded into wq on the host.)
    q2 = jnp.dot(qb, wq_ref[...].astype(jnp.bfloat16),
                 preferred_element_type=jnp.float32)          # [Nq, C]
    k2 = jnp.dot(xb, wk_ref[...].astype(jnp.bfloat16),
                 preferred_element_type=jnp.float32)          # [T, C]
    v2 = jnp.dot(xb, wv_ref[...].astype(jnp.bfloat16),
                 preferred_element_type=jnp.float32)          # [T, C]

    # Per-head softmax attention (head_dim is tiny; static unrolled loop).
    o_heads = []
    for hh in range(h):
        sl = slice(hh * d, (hh + 1) * d)
        q_h = q2[:, sl].astype(jnp.bfloat16)                  # [Nq, D]
        k_h = k2[:, sl].astype(jnp.bfloat16)                  # [T, D]
        v_h = v2[:, sl].astype(jnp.bfloat16)                  # [T, D]
        s = jax.lax.dot_general(q_h, k_h, (((1,), (1,)), ((), ())),
                                preferred_element_type=jnp.float32)  # [Nq, T]
        s = s - jnp.max(s, axis=-1, keepdims=True)
        p = jnp.exp(s)
        p = p * pl.reciprocal(jnp.sum(p, axis=-1, keepdims=True), approx=True)
        o_heads.append(jnp.dot(p.astype(jnp.bfloat16), v_h,
                               preferred_element_type=jnp.float32))  # [Nq, D]
    o = jnp.concatenate(o_heads, axis=-1)                     # [Nq, H*D] == [Nq, C]

    # Output projection with heads merged (single matmul, contraction H*D).
    co = jnp.dot(o.astype(jnp.bfloat16), wo_ref[...].astype(jnp.bfloat16),
                 preferred_element_type=jnp.float32) + bo_ref[...]   # [Nq, C]

    # Scatter updated rows back; unselected rows keep x exactly.  Row masks
    # are built in-kernel from an iota + SMEM scalars (no dense HBM inputs).
    row_ids = jax.lax.broadcasted_iota(jnp.int32, (t, 1), 0)          # [T, 1]
    out = x
    for i in range(nq):
        out = jnp.where(row_ids == sel_ref[b, i], co[i:i + 1, :], out)
    out_ref[...] = out.astype(out_ref.dtype)


def glca_cross_attention(x, sel_idx, gamma, beta, wq, wk, wv, wo, bo):
    B, T, C = x.shape
    Nq = sel_idx.shape[1]
    H = NUM_HEADS
    D = C // H
    kernel = functools.partial(_glca_kernel, num_heads=H, head_dim=D,
                               num_sel=Nq)
    full = lambda b, sel: (0, 0)        # weights stay resident across steps
    # TODO(synk): with buffer donation the output could additionally alias x
    # via input_output_aliases (and the store reduced to the Nq rows through a
    # manual-DMA scatter); skipped here to stay donation-agnostic.
    # TODO(synk): for large B on v6e/v7x, block several batch elements per
    # grid step to deepen the matmul M dimension; one per step at toy sizes.
    return pl.pallas_call(
        kernel,
        out_shape=jax.ShapeDtypeStruct((B, T, C), x.dtype),
        grid_spec=pltpu.PrefetchScalarGridSpec(
            num_scalar_prefetch=1,                 # sel_idx -> SMEM
            grid=(B,),                             # one batch element per step
            in_specs=[
                pl.BlockSpec((None, T, C), lambda b, sel: (b, 0, 0)),  # x[b]
                pl.BlockSpec((1, C), full),                            # LN gamma
                pl.BlockSpec((1, C), full),                            # LN beta
                pl.BlockSpec((C, C), full),                            # Wq (scaled)
                pl.BlockSpec((C, C), full),                            # Wk
                pl.BlockSpec((C, C), full),                            # Wv
                pl.BlockSpec((C, C), full),                            # Wo
                pl.BlockSpec((1, C), full),                            # proj bias
            ],
            out_specs=pl.BlockSpec((None, T, C), lambda b, sel: (b, 0, 0)),
        ),
        compiler_params=pltpu.CompilerParams(
            dimension_semantics=("parallel",)),    # megacore sharding on v7x
    )(sel_idx, x, gamma, beta, wq, wk, wv, wo, bo)


# ----------------------------------------------------------------------------
# Attention rollout + top-R patch selection (glue; data-dependent top-k)
# ----------------------------------------------------------------------------
def attention_rollout_select(attentions, ratio):
    """Attention rollout (head-mean + residual, row-normalized, chained across
    layers); select top-R patch tokens by CLS->patch score, excluding the CLS
    token itself.  Returned indices index into x (CLS at 0)."""
    B, H, T, _ = attentions[0].shape
    eye = jnp.eye(T, dtype=jnp.float32)
    rollout = jnp.broadcast_to(eye, (B, T, T))
    for attn in attentions:
        a = jnp.mean(attn, axis=1) + eye
        a = a / jnp.sum(a, axis=-1, keepdims=True)
        rollout = jnp.einsum('bij,bjk->bik', a, rollout)
    cls_to_patch = rollout[:, 0, 1:]                     # [B, T-1]
    num_sel = max(1, int(ratio * (T - 1)))
    _, patch_idx = jax.lax.top_k(cls_to_patch, num_sel)  # [B, num_sel]
    token_idx = patch_idx + 1                            # shift past CLS
    return token_idx, rollout


# ----------------------------------------------------------------------------
# Full GLCA forward: select queries, call the batch-gridded kernel.
# ----------------------------------------------------------------------------
def glca_forward(x, attentions, params, ratio=LOCAL_QUERY_RATIO):
    B, T, C = x.shape
    sel_idx, _ = attention_rollout_select(attentions, ratio)        # [B, Nq]
    scale = HEAD_DIM ** -0.5
    return glca_cross_attention(
        x,
        sel_idx.astype(jnp.int32),
        params['ln_gamma'].reshape(1, C),
        params['ln_beta'].reshape(1, C),
        params['wq_t'] * scale,          # fold 1/sqrt(head_dim) into Wq
        params['wk_t'],
        params['wv_t'],
        params['wo_t'],
        params['bo'].reshape(1, C),
    )


# ----------------------------------------------------------------------------
# Pure-JAX reference for correctness checking
# ----------------------------------------------------------------------------
def reference_forward(x, attentions, params, ratio=LOCAL_QUERY_RATIO):
    sel_idx, _ = attention_rollout_select(attentions, ratio)
    B = x.shape[0]
    batch_idx = jnp.arange(B)[:, None]
    local_q = x[batch_idx, sel_idx]

    def ln(t):
        mu = t.mean(-1, keepdims=True)
        var = ((t - mu) ** 2).mean(-1, keepdims=True)
        return (t - mu) / jnp.sqrt(var + LN_EPS) * params['ln_gamma'] + params['ln_beta']

    qn, kn, vn = ln(local_q), ln(x), ln(x)
    q = qn @ params['wq_t']
    k = kn @ params['wk_t']
    v = vn @ params['wv_t']
    Bq, Nq, C = q.shape
    Nk = k.shape[1]
    qh = q.reshape(Bq, Nq, NUM_HEADS, HEAD_DIM).transpose(0, 2, 1, 3)
    kh = k.reshape(Bq, Nk, NUM_HEADS, HEAD_DIM).transpose(0, 2, 1, 3)
    vh = v.reshape(Bq, Nk, NUM_HEADS, HEAD_DIM).transpose(0, 2, 1, 3)
    s = (qh @ kh.transpose(0, 1, 3, 2)) * HEAD_DIM ** -0.5
    p = jax.nn.softmax(s, axis=-1)
    o = (p @ vh).transpose(0, 2, 1, 3).reshape(Bq, Nq, C)
    co = o @ params['wo_t'] + params['bo']
    return x.at[batch_idx, sel_idx].set(co)


if __name__ == "__main__":
    key = jax.random.PRNGKey(0)
    B, T, C, H = 2, 17, DIM, NUM_HEADS   # 16 patches + CLS token
    ks = jax.random.split(key, 10)

    x = jax.random.normal(ks[0], (B, T, C), jnp.float32)
    # Two previous-layer attention maps (row-stochastic like real softmax attn).
    attn_layers = [
        jax.nn.softmax(jax.random.normal(ks[1], (B, H, T, T), jnp.float32), axis=-1),
        jax.nn.softmax(jax.random.normal(ks[2], (B, H, T, T), jnp.float32), axis=-1),
    ]

    # Deterministic parameter init (PyTorch shapes: Linear weight [out, in],
    # stored pre-transposed to [in, out]; qkv_bias=False).
    params = {
        'ln_gamma': jnp.ones((C,), jnp.float32) + 0.05 * jax.random.normal(ks[3], (C,)),
        'ln_beta': 0.02 * jax.random.normal(ks[4], (C,)),
        'wq_t': (0.02 * jax.random.normal(ks[5], (C, C), jnp.float32)).T,
        'wk_t': (0.02 * jax.random.normal(ks[6], (C, C), jnp.float32)).T,
        'wv_t': (0.02 * jax.random.normal(ks[7], (C, C), jnp.float32)).T,
        'wo_t': (0.02 * jax.random.normal(ks[8], (C, C), jnp.float32)).T,
        'bo': 0.01 * jax.random.normal(ks[9], (C,), jnp.float32),
    }

    glca = jax.jit(glca_forward)
    out = jax.block_until_ready(glca(x, attn_layers, params))

    ref = reference_forward(x, attn_layers, params)
    err = float(jnp.max(jnp.abs(out - ref)))
    assert err < 1e-2, f"mismatch vs reference: max abs err = {err}"

    # TODO(synk): dropout layers (attn_drop/proj_drop) are identity in eval mode
    # and are therefore omitted.
    print("KERNEL_OK")
</pallas_src>

<mosaic_0001>
module attributes {stable_mosaic.version = 11 : i64} {
  func.func @_glca_kernel(%arg0: i32, %arg1: memref<2x4xi32, #tpu.memory_space<smem>>, %arg2: memref<1x17x32xf32, #tpu.memory_space<vmem>>, %arg3: memref<1x32xf32, #tpu.memory_space<vmem>>, %arg4: memref<1x32xf32, #tpu.memory_space<vmem>>, %arg5: memref<32x32xf32, #tpu.memory_space<vmem>>, %arg6: memref<32x32xf32, #tpu.memory_space<vmem>>, %arg7: memref<32x32xf32, #tpu.memory_space<vmem>>, %arg8: memref<32x32xf32, #tpu.memory_space<vmem>>, %arg9: memref<1x32xf32, #tpu.memory_space<vmem>>, %arg10: memref<1x17x32xf32, #tpu.memory_space<vmem>>) attributes {dimension_semantics = [#tpu.dimension_semantics<parallel>], iteration_bounds = array<i64: 2>, scalar_prefetch = 1 : i64, scratch_operands = 0 : i64, tpu.core_type = #tpu.core_type<tc>, window_params = [{transform_indices = @transform_0, window_bounds = array<i64: 1, 17, 32>}, {pipeline_mode = #tpu.pipeline_mode<synchronous>, transform_indices = @transform_1, window_bounds = array<i64: 1, 32>}, {pipeline_mode = #tpu.pipeline_mode<synchronous>, transform_indices = @transform_2, window_bounds = array<i64: 1, 32>}, {pipeline_mode = #tpu.pipeline_mode<synchronous>, transform_indices = @transform_3, window_bounds = array<i64: 32, 32>}, {pipeline_mode = #tpu.pipeline_mode<synchronous>, transform_indices = @transform_4, window_bounds = array<i64: 32, 32>}, {pipeline_mode = #tpu.pipeline_mode<synchronous>, transform_indices = @transform_5, window_bounds = array<i64: 32, 32>}, {pipeline_mode = #tpu.pipeline_mode<synchronous>, transform_indices = @transform_6, window_bounds = array<i64: 32, 32>}, {pipeline_mode = #tpu.pipeline_mode<synchronous>, transform_indices = @transform_7, window_bounds = array<i64: 1, 32>}, {transform_indices = @transform_8, window_bounds = array<i64: 1, 17, 32>}]} {
    %c0 = arith.constant 0 : index
    %c0_0 = arith.constant 0 : index
    %c0_1 = arith.constant 0 : index
    %0 = vector.load %arg2[%c0, %c0_0, %c0_1] : memref<1x17x32xf32, #tpu.memory_space<vmem>>, vector<1x17x32xf32>
    %1 = vector.shape_cast %0 : vector<1x17x32xf32> to vector<17x32xf32>
    %c0_2 = arith.constant 0 : index
    %c0_3 = arith.constant 0 : index
    %2 = vector.load %arg3[%c0_2, %c0_3] : memref<1x32xf32, #tpu.memory_space<vmem>>, vector<1x32xf32>
    %c0_4 = arith.constant 0 : index
    %c0_5 = arith.constant 0 : index
    %3 = vector.load %arg4[%c0_4, %c0_5] : memref<1x32xf32, #tpu.memory_space<vmem>>, vector<1x32xf32>
    %cst = arith.constant dense<0.000000e+00> : vector<17xf32>
    %4 = vector.multi_reduction <add>, %1, %cst [1] : vector<17x32xf32> to vector<17xf32>
    %5 = vector.shape_cast %4 : vector<17xf32> to vector<17x1xf32>
    %cst_6 = arith.constant 3.200000e+01 : f32
    %6 = vector.broadcast %cst_6 : f32 to vector<17x1xf32>
    %7 = arith.divf %5, %6 : vector<17x1xf32>
    %8 = vector.broadcast %7 : vector<17x1xf32> to vector<17x32xf32>
    %9 = arith.subf %1, %8 : vector<17x32xf32>
    %10 = arith.mulf %9, %9 : vector<17x32xf32>
    %cst_7 = arith.constant dense<0.000000e+00> : vector<17xf32>
    %11 = vector.multi_reduction <add>, %10, %cst_7 [1] : vector<17x32xf32> to vector<17xf32>
    %12 = vector.shape_cast %11 : vector<17xf32> to vector<17x1xf32>
    %cst_8 = arith.constant 3.200000e+01 : f32
    %13 = vector.broadcast %cst_8 : f32 to vector<17x1xf32>
    %14 = arith.divf %12, %13 : vector<17x1xf32>
    %15 = vector.broadcast %7 : vector<17x1xf32> to vector<17x32xf32>
    %16 = arith.subf %1, %15 : vector<17x32xf32>
    %cst_9 = arith.constant 9.99999974E-6 : f32
    %17 = vector.broadcast %cst_9 : f32 to vector<17x1xf32>
    %18 = arith.addf %14, %17 : vector<17x1xf32>
    %19 = math.rsqrt %18 : vector<17x1xf32>
    %20 = vector.broadcast %19 : vector<17x1xf32> to vector<17x32xf32>
    %21 = arith.mulf %16, %20 : vector<17x32xf32>
    %22 = vector.broadcast %2 : vector<1x32xf32> to vector<17x32xf32>
    %23 = arith.mulf %21, %22 : vector<17x32xf32>
    %24 = vector.broadcast %3 : vector<1x32xf32> to vector<17x32xf32>
    %25 = arith.addf %23, %24 : vector<17x32xf32>
    %26 = arith.index_cast %arg0 : i32 to index
    %c0_10 = arith.constant 0 : index
    %27 = memref.load %arg1[%26, %c0_10] : memref<2x4xi32, #tpu.memory_space<smem>>
    %c0_11 = arith.constant 0 : index
    %28 = arith.index_cast %27 : i32 to index
    %c0_12 = arith.constant 0 : index
    %29 = vector.load %arg2[%c0_11, %28, %c0_12] : memref<1x17x32xf32, #tpu.memory_space<vmem>>, vector<1x1x32xf32>
    %30 = vector.shape_cast %29 : vector<1x1x32xf32> to vector<1x32xf32>
    %31 = arith.index_cast %arg0 : i32 to index
    %c1 = arith.constant 1 : index
    %32 = memref.load %arg1[%31, %c1] : memref<2x4xi32, #tpu.memory_space<smem>>
    %c0_13 = arith.constant 0 : index
    %33 = arith.index_cast %32 : i32 to index
    %c0_14 = arith.constant 0 : index
    %34 = vector.load %arg2[%c0_13, %33, %c0_14] : memref<1x17x32xf32, #tpu.memory_space<vmem>>, vector<1x1x32xf32>
    %35 = vector.shape_cast %34 : vector<1x1x32xf32> to vector<1x32xf32>
    %36 = arith.index_cast %arg0 : i32 to index
    %c2 = arith.constant 2 : index
    %37 = memref.load %arg1[%36, %c2] : memref<2x4xi32, #tpu.memory_space<smem>>
    %c0_15 = arith.constant 0 : index
    %38 = arith.index_cast %37 : i32 to index
    %c0_16 = arith.constant 0 : index
    %39 = vector.load %arg2[%c0_15, %38, %c0_16] : memref<1x17x32xf32, #tpu.memory_space<vmem>>, vector<1x1x32xf32>
    %40 = vector.shape_cast %39 : vector<1x1x32xf32> to vector<1x32xf32>
    %41 = arith.index_cast %arg0 : i32 to index
    %c3 = arith.constant 3 : index
    %42 = memref.load %arg1[%41, %c3] : memref<2x4xi32, #tpu.memory_space<smem>>
    %c0_17 = arith.constant 0 : index
    %43 = arith.index_cast %42 : i32 to index
    %c0_18 = arith.constant 0 : index
    %44 = vector.load %arg2[%c0_17, %43, %c0_18] : memref<1x17x32xf32, #tpu.memory_space<vmem>>, vector<1x1x32xf32>
    %45 = vector.shape_cast %44 : vector<1x1x32xf32> to vector<1x32xf32>
    %46 = tpu.concatenate %30, %35, %40, %45 in 0 : vector<1x32xf32>, vector<1x32xf32>, vector<1x32xf32>, vector<1x32xf32> -> vector<4x32xf32>
    %cst_19 = arith.constant dense<0.000000e+00> : vector<4xf32>
    %47 = vector.multi_reduction <add>, %46, %cst_19 [1] : vector<4x32xf32> to vector<4xf32>
    %48 = vector.shape_cast %47 : vector<4xf32> to vector<4x1xf32>
    %cst_20 = arith.constant 3.200000e+01 : f32
    %49 = vector.broadcast %cst_20 : f32 to vector<4x1xf32>
    %50 = arith.divf %48, %49 : vector<4x1xf32>
    %51 = vector.broadcast %50 : vector<4x1xf32> to vector<4x32xf32>
    %52 = arith.subf %46, %51 : vector<4x32xf32>
    %53 = arith.mulf %52, %52 : vector<4x32xf32>
    %cst_21 = arith.constant dense<0.000000e+00> : vector<4xf32>
    %54 = vector.multi_reduction <add>, %53, %cst_21 [1] : vector<4x32xf32> to vector<4xf32>
    %55 = vector.shape_cast %54 : vector<4xf32> to vector<4x1xf32>
    %cst_22 = arith.constant 3.200000e+01 : f32
    %56 = vector.broadcast %cst_22 : f32 to vector<4x1xf32>
    %57 = arith.divf %55, %56 : vector<4x1xf32>
    %58 = vector.broadcast %50 : vector<4x1xf32> to vector<4x32xf32>
    %59 = arith.subf %46, %58 : vector<4x32xf32>
    %cst_23 = arith.constant 9.99999974E-6 : f32
    %60 = vector.broadcast %cst_23 : f32 to vector<4x1xf32>
    %61 = arith.addf %57, %60 : vector<4x1xf32>
    %62 = math.rsqrt %61 : vector<4x1xf32>
    %63 = vector.broadcast %62 : vector<4x1xf32> to vector<4x32xf32>
    %64 = arith.mulf %59, %63 : vector<4x32xf32>
    %65 = vector.broadcast %2 : vector<1x32xf32> to vector<4x32xf32>
    %66 = arith.mulf %64, %65 : vector<4x32xf32>
    %67 = vector.broadcast %3 : vector<1x32xf32> to vector<4x32xf32>
    %68 = arith.addf %66, %67 : vector<4x32xf32>
    %69 = arith.truncf %25 : vector<17x32xf32> to vector<17x32xbf16>
    %70 = arith.truncf %68 : vector<4x32xf32> to vector<4x32xbf16>
    %c0_24 = arith.constant 0 : index
    %c0_25 = arith.constant 0 : index
    %71 = vector.load %arg5[%c0_24, %c0_25] : memref<32x32xf32, #tpu.memory_space<vmem>>, vector<32x32xf32>
    %72 = arith.truncf %71 : vector<32x32xf32> to vector<32x32xbf16>
    %cst_26 = arith.constant dense<0.000000e+00> : vector<4x32xf32>
    %73 = tpu.matmul %70, %72, %cst_26 {dimension_numbers = #tpu.dot_dimension_numbers<[1], [0], [0], [1], [0, 0, 1, 1], [], []>} : vector<4x32xbf16>, vector<32x32xbf16>, vector<4x32xf32> -> vector<4x32xf32>
    %c0_27 = arith.constant 0 : index
    %c0_28 = arith.constant 0 : index
    %74 = vector.load %arg6[%c0_27, %c0_28] : memref<32x32xf32, #tpu.memory_space<vmem>>, vector<32x32xf32>
    %75 = arith.truncf %74 : vector<32x32xf32> to vector<32x32xbf16>
    %cst_29 = arith.constant dense<0.000000e+00> : vector<17x32xf32>
    %76 = tpu.matmul %69, %75, %cst_29 {dimension_numbers = #tpu.dot_dimension_numbers<[1], [0], [0], [1], [0, 0, 1, 1], [], []>} : vector<17x32xbf16>, vector<32x32xbf16>, vector<17x32xf32> -> vector<17x32xf32>
    %c0_30 = arith.constant 0 : index
    %c0_31 = arith.constant 0 : index
    %77 = vector.load %arg7[%c0_30, %c0_31] : memref<32x32xf32, #tpu.memory_space<vmem>>, vector<32x32xf32>
    %78 = arith.truncf %77 : vector<32x32xf32> to vector<32x32xbf16>
    %cst_32 = arith.constant dense<0.000000e+00> : vector<17x32xf32>
    %79 = tpu.matmul %69, %78, %cst_32 {dimension_numbers = #tpu.dot_dimension_numbers<[1], [0], [0], [1], [0, 0, 1, 1], [], []>} : vector<17x32xbf16>, vector<32x32xbf16>, vector<17x32xf32> -> vector<17x32xf32>
    %80 = vector.extract_strided_slice %73 {offsets = [0, 0], sizes = [4, 8], strides = [1, 1]} : vector<4x32xf32> to vector<4x8xf32>
    %81 = arith.truncf %80 : vector<4x8xf32> to vector<4x8xbf16>
    %82 = vector.extract_strided_slice %76 {offsets = [0, 0], sizes = [17, 8], strides = [1, 1]} : vector<17x32xf32> to vector<17x8xf32>
    %83 = arith.truncf %82 : vector<17x8xf32> to vector<17x8xbf16>
    %84 = vector.extract_strided_slice %79 {offsets = [0, 0], sizes = [17, 8], strides = [1, 1]} : vector<17x32xf32> to vector<17x8xf32>
    %85 = arith.truncf %84 : vector<17x8xf32> to vector<17x8xbf16>
    %cst_33 = arith.constant dense<0.000000e+00> : vector<4x17xf32>
    %86 = tpu.matmul %81, %83, %cst_33 {dimension_numbers = #tpu.dot_dimension_numbers<[1], [1], [0], [0], [0, 0, 1, 0], [], []>} : vector<4x8xbf16>, vector<17x8xbf16>, vector<4x17xf32> -> vector<4x17xf32>
    %cst_34 = arith.constant dense<0xFF800000> : vector<4xf32>
    %87 = vector.multi_reduction <maximumf>, %86, %cst_34 [1] : vector<4x17xf32> to vector<4xf32>
    %88 = vector.shape_cast %87 : vector<4xf32> to vector<4x1xf32>
    %89 = vector.broadcast %88 : vector<4x1xf32> to vector<4x17xf32>
    %90 = arith.subf %86, %89 : vector<4x17xf32>
    %91 = math.exp %90 : vector<4x17xf32>
    %cst_35 = arith.constant dense<0.000000e+00> : vector<4xf32>
    %92 = vector.multi_reduction <add>, %91, %cst_35 [1] : vector<4x17xf32> to vector<4xf32>
    %93 = vector.shape_cast %92 : vector<4xf32> to vector<4x1xf32>
    %94 = tpu.reciprocal %93 {approx = true} : vector<4x1xf32> -> vector<4x1xf32>
    %95 = vector.broadcast %94 : vector<4x1xf32> to vector<4x17xf32>
    %96 = arith.mulf %91, %95 : vector<4x17xf32>
    %97 = arith.truncf %96 : vector<4x17xf32> to vector<4x17xbf16>
    %cst_36 = arith.constant dense<0.000000e+00> : vector<4x8xf32>
    %98 = tpu.matmul %97, %85, %cst_36 {dimension_numbers = #tpu.dot_dimension_numbers<[1], [0], [0], [1], [0, 0, 1, 1], [], []>} : vector<4x17xbf16>, vector<17x8xbf16>, vector<4x8xf32> -> vector<4x8xf32>
    %99 = vector.extract_strided_slice %73 {offsets = [0, 8], sizes = [4, 8], strides = [1, 1]} : vector<4x32xf32> to vector<4x8xf32>
    %100 = arith.truncf %99 : vector<4x8xf32> to vector<4x8xbf16>
    %101 = vector.extract_strided_slice %76 {offsets = [0, 8], sizes = [17, 8], strides = [1, 1]} : vector<17x32xf32> to vector<17x8xf32>
    %102 = arith.truncf %101 : vector<17x8xf32> to vector<17x8xbf16>
    %103 = vector.extract_strided_slice %79 {offsets = [0, 8], sizes = [17, 8], strides = [1, 1]} : vector<17x32xf32> to vector<17x8xf32>
    %104 = arith.truncf %103 : vector<17x8xf32> to vector<17x8xbf16>
    %cst_37 = arith.constant dense<0.000000e+00> : vector<4x17xf32>
    %105 = tpu.matmul %100, %102, %cst_37 {dimension_numbers = #tpu.dot_dimension_numbers<[1], [1], [0], [0], [0, 0, 1, 0], [], []>} : vector<4x8xbf16>, vector<17x8xbf16>, vector<4x17xf32> -> vector<4x17xf32>
    %cst_38 = arith.constant dense<0xFF800000> : vector<4xf32>
    %106 = vector.multi_reduction <maximumf>, %105, %cst_38 [1] : vector<4x17xf32> to vector<4xf32>
    %107 = vector.shape_cast %106 : vector<4xf32> to vector<4x1xf32>
    %108 = vector.broadcast %107 : vector<4x1xf32> to vector<4x17xf32>
    %109 = arith.subf %105, %108 : vector<4x17xf32>
    %110 = math.exp %109 : vector<4x17xf32>
    %cst_39 = arith.constant dense<0.000000e+00> : vector<4xf32>
    %111 = vector.multi_reduction <add>, %110, %cst_39 [1] : vector<4x17xf32> to vector<4xf32>
    %112 = vector.shape_cast %111 : vector<4xf32> to vector<4x1xf32>
    %113 = tpu.reciprocal %112 {approx = true} : vector<4x1xf32> -> vector<4x1xf32>
    %114 = vector.broadcast %113 : vector<4x1xf32> to vector<4x17xf32>
    %115 = arith.mulf %110, %114 : vector<4x17xf32>
    %116 = arith.truncf %115 : vector<4x17xf32> to vector<4x17xbf16>
    %cst_40 = arith.constant dense<0.000000e+00> : vector<4x8xf32>
    %117 = tpu.matmul %116, %104, %cst_40 {dimension_numbers = #tpu.dot_dimension_numbers<[1], [0], [0], [1], [0, 0, 1, 1], [], []>} : vector<4x17xbf16>, vector<17x8xbf16>, vector<4x8xf32> -> vector<4x8xf32>
    %118 = vector.extract_strided_slice %73 {offsets = [0, 16], sizes = [4, 8], strides = [1, 1]} : vector<4x32xf32> to vector<4x8xf32>
    %119 = arith.truncf %118 : vector<4x8xf32> to vector<4x8xbf16>
    %120 = vector.extract_strided_slice %76 {offsets = [0, 16], sizes = [17, 8], strides = [1, 1]} : vector<17x32xf32> to vector<17x8xf32>
    %121 = arith.truncf %120 : vector<17x8xf32> to vector<17x8xbf16>
    %122 = vector.extract_strided_slice %79 {offsets = [0, 16], sizes = [17, 8], strides = [1, 1]} : vector<17x32xf32> to vector<17x8xf32>
    %123 = arith.truncf %122 : vector<17x8xf32> to vector<17x8xbf16>
    %cst_41 = arith.constant dense<0.000000e+00> : vector<4x17xf32>
    %124 = tpu.matmul %119, %121, %cst_41 {dimension_numbers = #tpu.dot_dimension_numbers<[1], [1], [0], [0], [0, 0, 1, 0], [], []>} : vector<4x8xbf16>, vector<17x8xbf16>, vector<4x17xf32> -> vector<4x17xf32>
    %cst_42 = arith.constant dense<0xFF800000> : vector<4xf32>
    %125 = vector.multi_reduction <maximumf>, %124, %cst_42 [1] : vector<4x17xf32> to vector<4xf32>
    %126 = vector.shape_cast %125 : vector<4xf32> to vector<4x1xf32>
    %127 = vector.broadcast %126 : vector<4x1xf32> to vector<4x17xf32>
    %128 = arith.subf %124, %127 : vector<4x17xf32>
    %129 = math.exp %128 : vector<4x17xf32>
    %cst_43 = arith.constant dense<0.000000e+00> : vector<4xf32>
    %130 = vector.multi_reduction <add>, %129, %cst_43 [1] : vector<4x17xf32> to vector<4xf32>
    %131 = vector.shape_cast %130 : vector<4xf32> to vector<4x1xf32>
    %132 = tpu.reciprocal %131 {approx = true} : vector<4x1xf32> -> vector<4x1xf32>
    %133 = vector.broadcast %132 : vector<4x1xf32> to vector<4x17xf32>
    %134 = arith.mulf %129, %133 : vector<4x17xf32>
    %135 = arith.truncf %134 : vector<4x17xf32> to vector<4x17xbf16>
    %cst_44 = arith.constant dense<0.000000e+00> : vector<4x8xf32>
    %136 = tpu.matmul %135, %123, %cst_44 {dimension_numbers = #tpu.dot_dimension_numbers<[1], [0], [0], [1], [0, 0, 1, 1], [], []>} : vector<4x17xbf16>, vector<17x8xbf16>, vector<4x8xf32> -> vector<4x8xf32>
    %137 = vector.extract_strided_slice %73 {offsets = [0, 24], sizes = [4, 8], strides = [1, 1]} : vector<4x32xf32> to vector<4x8xf32>
    %138 = arith.truncf %137 : vector<4x8xf32> to vector<4x8xbf16>
    %139 = vector.extract_strided_slice %76 {offsets = [0, 24], sizes = [17, 8], strides = [1, 1]} : vector<17x32xf32> to vector<17x8xf32>
    %140 = arith.truncf %139 : vector<17x8xf32> to vector<17x8xbf16>
    %141 = vector.extract_strided_slice %79 {offsets = [0, 24], sizes = [17, 8], strides = [1, 1]} : vector<17x32xf32> to vector<17x8xf32>
    %142 = arith.truncf %141 : vector<17x8xf32> to vector<17x8xbf16>
    %cst_45 = arith.constant dense<0.000000e+00> : vector<4x17xf32>
    %143 = tpu.matmul %138, %140, %cst_45 {dimension_numbers = #tpu.dot_dimension_numbers<[1], [1], [0], [0], [0, 0, 1, 0], [], []>} : vector<4x8xbf16>, vector<17x8xbf16>, vector<4x17xf32> -> vector<4x17xf32>
    %cst_46 = arith.constant dense<0xFF800000> : vector<4xf32>
    %144 = vector.multi_reduction <maximumf>, %143, %cst_46 [1] : vector<4x17xf32> to vector<4xf32>
    %145 = vector.shape_cast %144 : vector<4xf32> to vector<4x1xf32>
    %146 = vector.broadcast %145 : vector<4x1xf32> to vector<4x17xf32>
    %147 = arith.subf %143, %146 : vector<4x17xf32>
    %148 = math.exp %147 : vector<4x17xf32>
    %cst_47 = arith.constant dense<0.000000e+00> : vector<4xf32>
    %149 = vector.multi_reduction <add>, %148, %cst_47 [1] : vector<4x17xf32> to vector<4xf32>
    %150 = vector.shape_cast %149 : vector<4xf32> to vector<4x1xf32>
    %151 = tpu.reciprocal %150 {approx = true} : vector<4x1xf32> -> vector<4x1xf32>
    %152 = vector.broadcast %151 : vector<4x1xf32> to vector<4x17xf32>
    %153 = arith.mulf %148, %152 : vector<4x17xf32>
    %154 = arith.truncf %153 : vector<4x17xf32> to vector<4x17xbf16>
    %cst_48 = arith.constant dense<0.000000e+00> : vector<4x8xf32>
    %155 = tpu.matmul %154, %142, %cst_48 {dimension_numbers = #tpu.dot_dimension_numbers<[1], [0], [0], [1], [0, 0, 1, 1], [], []>} : vector<4x17xbf16>, vector<17x8xbf16>, vector<4x8xf32> -> vector<4x8xf32>
    %156 = tpu.concatenate %98, %117, %136, %155 in 1 : vector<4x8xf32>, vector<4x8xf32>, vector<4x8xf32>, vector<4x8xf32> -> vector<4x32xf32>
    %157 = arith.truncf %156 : vector<4x32xf32> to vector<4x32xbf16>
    %c0_49 = arith.constant 0 : index
    %c0_50 = arith.constant 0 : index
    %158 = vector.load %arg8[%c0_49, %c0_50] : memref<32x32xf32, #tpu.memory_space<vmem>>, vector<32x32xf32>
    %159 = arith.truncf %158 : vector<32x32xf32> to vector<32x32xbf16>
    %cst_51 = arith.constant dense<0.000000e+00> : vector<4x32xf32>
    %160 = tpu.matmul %157, %159, %cst_51 {dimension_numbers = #tpu.dot_dimension_numbers<[1], [0], [0], [1], [0, 0, 1, 1], [], []>} : vector<4x32xbf16>, vector<32x32xbf16>, vector<4x32xf32> -> vector<4x32xf32>
    %c0_52 = arith.constant 0 : index
    %c0_53 = arith.constant 0 : index
    %161 = vector.load %arg9[%c0_52, %c0_53] : memref<1x32xf32, #tpu.memory_space<vmem>>, vector<1x32xf32>
    %162 = vector.broadcast %161 : vector<1x32xf32> to vector<4x32xf32>
    %163 = arith.addf %160, %162 : vector<4x32xf32>
    %164 = tpu.iota {dimensions = array<i32: 0>} : vector<17x1xi32>
    %165 = arith.index_cast %arg0 : i32 to index
    %c0_54 = arith.constant 0 : index
    %166 = memref.load %arg1[%165, %c0_54] : memref<2x4xi32, #tpu.memory_space<smem>>
    %167 = vector.broadcast %166 : i32 to vector<17x1xi32>
    %168 = arith.cmpi eq, %164, %167 : vector<17x1xi32>
    %169 = vector.extract_strided_slice %163 {offsets = [0, 0], sizes = [1, 32], strides = [1, 1]} : vector<4x32xf32> to vector<1x32xf32>
    %170 = vector.shape_cast %168 : vector<17x1xi1> to vector<17x1xi1>
    %171 = vector.broadcast %170 : vector<17x1xi1> to vector<17x32xi1>
    %172 = vector.shape_cast %169 : vector<1x32xf32> to vector<1x32xf32>
    %173 = vector.broadcast %172 : vector<1x32xf32> to vector<17x32xf32>
    %174 = arith.select %171, %173, %1 : vector<17x32xi1>, vector<17x32xf32>
    %175 = arith.index_cast %arg0 : i32 to index
    %c1_55 = arith.constant 1 : index
    %176 = memref.load %arg1[%175, %c1_55] : memref<2x4xi32, #tpu.memory_space<smem>>
    %177 = vector.broadcast %176 : i32 to vector<17x1xi32>
    %178 = arith.cmpi eq, %164, %177 : vector<17x1xi32>
    %179 = vector.extract_strided_slice %163 {offsets = [1, 0], sizes = [1, 32], strides = [1, 1]} : vector<4x32xf32> to vector<1x32xf32>
    %180 = vector.shape_cast %178 : vector<17x1xi1> to vector<17x1xi1>
    %181 = vector.broadcast %180 : vector<17x1xi1> to vector<17x32xi1>
    %182 = vector.shape_cast %179 : vector<1x32xf32> to vector<1x32xf32>
    %183 = vector.broadcast %182 : vector<1x32xf32> to vector<17x32xf32>
    %184 = arith.select %181, %183, %174 : vector<17x32xi1>, vector<17x32xf32>
    %185 = arith.index_cast %arg0 : i32 to index
    %c2_56 = arith.constant 2 : index
    %186 = memref.load %arg1[%185, %c2_56] : memref<2x4xi32, #tpu.memory_space<smem>>
    %187 = vector.broadcast %186 : i32 to vector<17x1xi32>
    %188 = arith.cmpi eq, %164, %187 : vector<17x1xi32>
    %189 = vector.extract_strided_slice %163 {offsets = [2, 0], sizes = [1, 32], strides = [1, 1]} : vector<4x32xf32> to vector<1x32xf32>
    %190 = vector.shape_cast %188 : vector<17x1xi1> to vector<17x1xi1>
    %191 = vector.broadcast %190 : vector<17x1xi1> to vector<17x32xi1>
    %192 = vector.shape_cast %189 : vector<1x32xf32> to vector<1x32xf32>
    %193 = vector.broadcast %192 : vector<1x32xf32> to vector<17x32xf32>
    %194 = arith.select %191, %193, %184 : vector<17x32xi1>, vector<17x32xf32>
    %195 = arith.index_cast %arg0 : i32 to index
    %c3_57 = arith.constant 3 : index
    %196 = memref.load %arg1[%195, %c3_57] : memref<2x4xi32, #tpu.memory_space<smem>>
    %197 = vector.broadcast %196 : i32 to vector<17x1xi32>
    %198 = arith.cmpi eq, %164, %197 : vector<17x1xi32>
    %199 = vector.extract_strided_slice %163 {offsets = [3, 0], sizes = [1, 32], strides = [1, 1]} : vector<4x32xf32> to vector<1x32xf32>
    %200 = vector.shape_cast %198 : vector<17x1xi1> to vector<17x1xi1>
    %201 = vector.broadcast %200 : vector<17x1xi1> to vector<17x32xi1>
    %202 = vector.shape_cast %199 : vector<1x32xf32> to vector<1x32xf32>
    %203 = vector.broadcast %202 : vector<1x32xf32> to vector<17x32xf32>
    %204 = arith.select %201, %203, %194 : vector<17x32xi1>, vector<17x32xf32>
    %c0_58 = arith.constant 0 : index
    %c0_59 = arith.constant 0 : index
    %c0_60 = arith.constant 0 : index
    %205 = vector.load %arg10[%c0_58, %c0_59, %c0_60] : memref<1x17x32xf32, #tpu.memory_space<vmem>>, vector<1x17x32xf32>
    %206 = vector.shape_cast %205 : vector<1x17x32xf32> to vector<17x32xf32>
    %207 = vector.shape_cast %204 : vector<17x32xf32> to vector<1x17x32xf32>
    tpu.vector_store %arg10[%c0_58, %c0_59, %c0_60], %207 {strides = array<i32>} : memref<1x17x32xf32, #tpu.memory_space<vmem>>, vector<1x17x32xf32>,
    return
  }
  func.func @transform_0(%arg0: i32, %arg1: memref<2x4xi32, #tpu.memory_space<smem>>) -> (i32, i32, i32) {
    %c0_i32 = arith.constant 0 : i32
    %c0_i32_0 = arith.constant 0 : i32
    %c0_i32_1 = arith.constant 0 : i32
    return %arg0, %c0_i32, %c0_i32_0 : i32, i32, i32
  }
  func.func @transform_1(%arg0: i32, %arg1: memref<2x4xi32, #tpu.memory_space<smem>>) -> (i32, i32) {
    %c0_i32 = arith.constant 0 : i32
    %c0_i32_0 = arith.constant 0 : i32
    %c0_i32_1 = arith.constant 0 : i32
    return %c0_i32, %c0_i32_0 : i32, i32
  }
  func.func @transform_2(%arg0: i32, %arg1: memref<2x4xi32, #tpu.memory_space<smem>>) -> (i32, i32) {
    %c0_i32 = arith.constant 0 : i32
    %c0_i32_0 = arith.constant 0 : i32
    %c0_i32_1 = arith.constant 0 : i32
    return %c0_i32, %c0_i32_0 : i32, i32
  }
  func.func @transform_3(%arg0: i32, %arg1: memref<2x4xi32, #tpu.memory_space<smem>>) -> (i32, i32) {
    %c0_i32 = arith.constant 0 : i32
    %c0_i32_0 = arith.constant 0 : i32
    %c0_i32_1 = arith.constant 0 : i32
    return %c0_i32, %c0_i32_0 : i32, i32
  }
  func.func @transform_4(%arg0: i32, %arg1: memref<2x4xi32, #tpu.memory_space<smem>>) -> (i32, i32) {
    %c0_i32 = arith.constant 0 : i32
    %c0_i32_0 = arith.constant 0 : i32
    %c0_i32_1 = arith.constant 0 : i32
    return %c0_i32, %c0_i32_0 : i32, i32
  }
  func.func @transform_5(%arg0: i32, %arg1: memref<2x4xi32, #tpu.memory_space<smem>>) -> (i32, i32) {
    %c0_i32 = arith.constant 0 : i32
    %c0_i32_0 = arith.constant 0 : i32
    %c0_i32_1 = arith.constant 0 : i32
    return %c0_i32, %c0_i32_0 : i32, i32
  }
  func.func @transform_6(%arg0: i32, %arg1: memref<2x4xi32, #tpu.memory_space<smem>>) -> (i32, i32) {
    %c0_i32 = arith.constant 0 : i32
    %c0_i32_0 = arith.constant 0 : i32
    %c0_i32_1 = arith.constant 0 : i32
    return %c0_i32, %c0_i32_0 : i32, i32
  }
  func.func @transform_7(%arg0: i32, %arg1: memref<2x4xi32, #tpu.memory_space<smem>>) -> (i32, i32) {
    %c0_i32 = arith.constant 0 : i32
    %c0_i32_0 = arith.constant 0 : i32
    %c0_i32_1 = arith.constant 0 : i32
    return %c0_i32, %c0_i32_0 : i32, i32
  }
  func.func @transform_8(%arg0: i32, %arg1: memref<2x4xi32, #tpu.memory_space<smem>>) -> (i32, i32, i32) {
    %c0_i32 = arith.constant 0 : i32
    %c0_i32_0 = arith.constant 0 : i32
    %c0_i32_1 = arith.constant 0 : i32
    return %arg0, %c0_i32, %c0_i32_0 : i32, i32, i32
  }
}

</mosaic_0001>

<llo_original>
// kernel: glca_forward.1
$region0: #{glca_forward.1}
  #allocation0 [shape = 'u32[]', space=smem, size = 0x4, offset = 0x4, fixed_abs, tag = 'smem constant byte address 0x4 - core index']
  #allocation1 [shape = 'u32[144,128]{1,0:T(1,128)}', space=vmem, size = 0x12000, scoped, tag = 'internal scratch']
  #allocation2 [shape = 's32[1]{0}', space=sflag, size = 0x4, scoped, tag = 'scoped memory for glca_forward.1']
  #allocation3 [shape = 'u8[1024]{0}', space=smem, size = 0x400, scoped, tag = 'prefetched SMEM operand 0']
  %s0 = inlined_call_operand.vmem [shape: s32[2,4], index: 0, kind: input, shape index: {}]
  %s1 = inlined_call_operand.vmem [shape: f32[2,17,32], index: 1, kind: input, shape index: {}]
  %s2 = inlined_call_operand.vmem [shape: f32[1,32], index: 2, kind: input, shape index: {}]
  %s3 = inlined_call_operand.vmem [shape: f32[1,32], index: 3, kind: input, shape index: {}]
  %s4 = inlined_call_operand.vmem [shape: f32[32,32], index: 4, kind: input, shape index: {}]
  %s5 = inlined_call_operand.vmem [shape: f32[32,32], index: 5, kind: input, shape index: {}]
  %s6 = inlined_call_operand.vmem [shape: f32[32,32], index: 6, kind: input, shape index: {}]
  %s7 = inlined_call_operand.vmem [shape: f32[32,32], index: 7, kind: input, shape index: {}]
  %s8 = inlined_call_operand.vmem [shape: f32[1,32], index: 8, kind: input, shape index: {}]
  %s9 = inlined_call_operand.vmem [shape: f32[2,17,32], index: 9, kind: output, shape index: {}]
  %s10 = sld [smem:[#allocation0]]
  $region65: #{glca_forward.1} parent=0
    _
  %s12 = ssub.s32 1, %s10
  %s13 = scalar_select 0, %s12, %s10
  %s14 = sshll.u32 %s0, 4
  %s15 = int_to_ptr.vmem [resolvable:$true] %s14
  %17 = dma.vmem_to_smem %s15, 32, [#allocation3], [#allocation2]
  %18 = dma.done [#allocation2], 32
  %19 = sfence
  loop: start=0, step=1, limit=4
  $region2: #{glca_forward.1} parent=0 // loop_pre_header
    _
  $region3: #{glca_forward.1} parent=0 // loop_header
    %s21 = sphi 0, %s25
    %p22 = scmp.ge.s32.totalorder %s21, 4
    %s31 = sphi 0, %s33
    %s34 = sphi 0, %s31
    %s35 = sphi 0, %s34
    %s51 = sphi 0, %s35
    %s55 = sphi 0, %s55
    %s57 = sphi 0, %s55
    %s58 = sphi 0, %s57
    %s72 = sphi 0, %s58
    %s76 = sphi 0, %s76
    %s78 = sphi 0, %s76
    %s79 = sphi 0, %s78
    %s93 = sphi 0, %s79
    %s97 = sphi 0, %s97
    %s99 = sphi 0, %s97
    %s100 = sphi 0, %s99
    %s114 = sphi 0, %s100
    %s118 = sphi 0, %s118
    %s120 = sphi 0, %s118
    %s121 = sphi 0, %s120
    %s135 = sphi 0, %s121
    %s139 = sphi 0, %s139
    %s141 = sphi 0, %s139
    %s142 = sphi 0, %s141
    %s156 = sphi 0, %s142
    %s160 = sphi 0, %s160
    %s162 = sphi 0, %s160
    %s163 = sphi 0, %s162
    %s177 = sphi 0, %s163
    %s181 = sphi 0, %s181
    %s183 = sphi 0, %s181
    %s184 = sphi 0, %s183
    %s198 = sphi 0, %s184
    %s204 = sphi 0, %s206
    %s207 = sphi 0, %s204
    %s208 = sphi 0, %s207
    %s224 = sphi 0, %s208
  $region4: #{glca_forward.1} parent=0 // loop_header_branch
    %24 = sbr.rel (%p22) target = $region8
  $region5: #{glca_forward.1} parent=0 // loop_body
    %s26 = ssub.s32 %s21, 1
    %s27 = ssub.s32 %s21, 2
    %s28 = sadd.s32 %s21, 1
    %s29 = ssub.s32 %s21, %s28
    %p30 = scmp.eq.s32.totalorder %s29, 0
    %s32 = sadd.s32 %s31, 1
    %s33 = scalar_select %p30, %s31, %s32
    %p36 = pneg %p30
    %p37 = scmp.eq.s32.totalorder %s21, 1
    %p38 = por %p36, %p37
    %p39 = scmp.ne.s32.totalorder %s31, %s34
    %p40 = scmp.eq.s32.totalorder %s21, 0
    %p41 = por %p39, %p40
    %p42 = scmp.ne.s32.totalorder %s31, %s34
    %p43 = scmp.eq.s32.totalorder %s26, 1
    %p44 = por %p42, %p43
    %p45 = scmp.ne.s32.totalorder %s34, %s35
    %p46 = scmp.eq.s32.totalorder %s26, 0
    %p47 = por %p45, %p46
    %p48 = scmp.ne.s32.totalorder %s34, %s35
    %p49 = scmp.eq.s32.totalorder %s27, 1
    %p50 = por %p48, %p49
    %p52 = scmp.ne.s32.totalorder %s35, %s51
    %p53 = scmp.eq.s32.totalorder %s27, 0
    %p54 = por %p52, %p53
    %s56 = sadd.s32 %s55, 1
    %p59 = scmp.eq.s32.totalorder %s21, 1
    %p60 = scmp.ne.s32.totalorder %s55, %s57
    %p61 = scmp.eq.s32.totalorder %s21, 0
    %p62 = por %p60, %p61
    %p63 = scmp.ne.s32.totalorder %s55, %s57
    %p64 = scmp.eq.s32.totalorder %s26, 1
    %p65 = por %p63, %p64
    %p66 = scmp.ne.s32.totalorder %s57, %s58
    %p67 = scmp.eq.s32.totalorder %s26, 0
    %p68 = por %p66, %p67
    %p69 = scmp.ne.s32.totalorder %s57, %s58
    %p70 = scmp.eq.s32.totalorder %s27, 1
    %p71 = por %p69, %p70
    %p73 = scmp.ne.s32.totalorder %s58, %s72
    %p74 = scmp.eq.s32.totalorder %s27, 0
    %p75 = por %p73, %p74
    %s77 = sadd.s32 %s76, 1
    %p80 = scmp.eq.s32.totalorder %s21, 1
    %p81 = scmp.ne.s32.totalorder %s76, %s78
    %p82 = scmp.eq.s32.totalorder %s21, 0
    %p83 = por %p81, %p82
    %p84 = scmp.ne.s32.totalorder %s76, %s78
    %p85 = scmp.eq.s32.totalorder %s26, 1
    %p86 = por %p84, %p85
    %p87 = scmp.ne.s32.totalorder %s78, %s79
    %p88 = scmp.eq.s32.totalorder %s26, 0
    %p89 = por %p87, %p88
    %p90 = scmp.ne.s32.totalorder %s78, %s79
    %p91 = scmp.eq.s32.totalorder %s27, 1
    %p92 = por %p90, %p91
    %p94 = scmp.ne.s32.totalorder %s79, %s93
    %p95 = scmp.eq.s32.totalorder %s27, 0
    %p96 = por %p94, %p95
    %s98 = sadd.s32 %s97, 1
    %p101 = scmp.eq.s32.totalorder %s21, 1
    %p102 = scmp.ne.s32.totalorder %s97, %s99
    %p103 = scmp.eq.s32.totalorder %s21, 0
    %p104 = por %p102, %p103
    %p105 = scmp.ne.s32.totalorder %s97, %s99
    %p106 = scmp.eq.s32.totalorder %s26, 1
    %p107 = por %p105, %p106
    %p108 = scmp.ne.s32.totalorder %s99, %s100
    %p109 = scmp.eq.s32.totalorder %s26, 0
    %p110 = por %p108, %p109
    %p111 = scmp.ne.s32.totalorder %s99, %s100
    %p112 = scmp.eq.s32.totalorder %s27, 1
    %p113 = por %p111, %p112
    %p115 = scmp.ne.s32.totalorder %s100, %s114
    %p116 = scmp.eq.s32.totalorder %s27, 0
    %p117 = por %p115, %p116
    %s119 = sadd.s32 %s118, 1
    %p122 = scmp.eq.s32.totalorder %s21, 1
    %p123 = scmp.ne.s32.totalorder %s118, %s120
    %p124 = scmp.eq.s32.totalorder %s21, 0
    %p125 = por %p123, %p124
    %p126 = scmp.ne.s32.totalorder %s118, %s120
    %p127 = scmp.eq.s32.totalorder %s26, 1
    %p128 = por %p126, %p127
    %p129 = scmp.ne.s32.totalorder %s120, %s121
    %p130 = scmp.eq.s32.totalorder %s26, 0
    %p131 = por %p129, %p130
    %p132 = scmp.ne.s32.totalorder %s120, %s121
    %p133 = scmp.eq.s32.totalorder %s27, 1
    %p134 = por %p132, %p133
    %p136 = scmp.ne.s32.totalorder %s121, %s135
    %p137 = scmp.eq.s32.totalorder %s27, 0
    %p138 = por %p136, %p137
    %s140 = sadd.s32 %s139, 1
    %p143 = scmp.eq.s32.totalorder %s21, 1
    %p144 = scmp.ne.s32.totalorder %s139, %s141
    %p145 = scmp.eq.s32.totalorder %s21, 0
    %p146 = por %p144, %p145
    %p147 = scmp.ne.s32.totalorder %s139, %s141
    %p148 = scmp.eq.s32.totalorder %s26, 1
    %p149 = por %p147, %p148
    %p150 = scmp.ne.s32.totalorder %s141, %s142
    %p151 = scmp.eq.s32.totalorder %s26, 0
    %p152 = por %p150, %p151
    %p153 = scmp.ne.s32.totalorder %s141, %s142
    %p154 = scmp.eq.s32.totalorder %s27, 1
    %p155 = por %p153, %p154
    %p157 = scmp.ne.s32.totalorder %s142, %s156
    %p158 = scmp.eq.s32.totalorder %s27, 0
    %p159 = por %p157, %p158
    %s161 = sadd.s32 %s160, 1
    %p164 = scmp.eq.s32.totalorder %s21, 1
    %p165 = scmp.ne.s32.totalorder %s160, %s162
    %p166 = scmp.eq.s32.totalorder %s21, 0
    %p167 = por %p165, %p166
    %p168 = scmp.ne.s32.totalorder %s160, %s162
    %p169 = scmp.eq.s32.totalorder %s26, 1
    %p170 = por %p168, %p169
    %p171 = scmp.ne.s32.totalorder %s162, %s163
    %p172 = scmp.eq.s32.totalorder %s26, 0
    %p173 = por %p171, %p172
    %p174 = scmp.ne.s32.totalorder %s162, %s163
    %p175 = scmp.eq.s32.totalorder %s27, 1
    %p176 = por %p174, %p175
    %p178 = scmp.ne.s32.totalorder %s163, %s177
    %p179 = scmp.eq.s32.totalorder %s27, 0
    %p180 = por %p178, %p179
    %s182 = sadd.s32 %s181, 1
    %p185 = scmp.eq.s32.totalorder %s21, 1
    %p186 = scmp.ne.s32.totalorder %s181, %s183
    %p187 = scmp.eq.s32.totalorder %s21, 0
    %p188 = por %p186, %p187
    %p189 = scmp.ne.s32.totalorder %s181, %s183
    %p190 = scmp.eq.s32.totalorder %s26, 1
    %p191 = por %p189, %p190
    %p192 = scmp.ne.s32.totalorder %s183, %s184
    %p193 = scmp.eq.s32.totalorder %s26, 0
    %p194 = por %p192, %p193
    %p195 = scmp.ne.s32.totalorder %s183, %s184
    %p196 = scmp.eq.s32.totalorder %s27, 1
    %p197 = por %p195, %p196
    %p199 = scmp.ne.s32.totalorder %s184, %s198
    %p200 = scmp.eq.s32.totalorder %s27, 0
    %p201 = por %p199, %p200
    %s202 = ssub.s32 %s21, %s28
    %p203 = scmp.eq.s32.totalorder %s202, 0
    %s205 = sadd.s32 %s204, 1
    %s206 = scalar_select %p203, %s204, %s205
    %p209 = pneg %p203
    %p210 = scmp.eq.s32.totalorder %s21, 1
    %p211 = por %p209, %p210
    %p212 = scmp.ne.s32.totalorder %s204, %s207
    %p213 = scmp.eq.s32.totalorder %s21, 0
    %p214 = por %p212, %p213
    %p215 = scmp.ne.s32.totalorder %s204, %s207
    %p216 = scmp.eq.s32.totalorder %s26, 1
    %p217 = por %p215, %p216
    %p218 = scmp.ne.s32.totalorder %s207, %s208
    %p219 = scmp.eq.s32.totalorder %s26, 0
    %p220 = por %p218, %p219
    %p221 = scmp.ne.s32.totalorder %s207, %s208
    %p222 = scmp.eq.s32.totalorder %s27, 1
    %p223 = por %p221, %p222
    %p225 = scmp.ne.s32.totalorder %s208, %s224
    %p226 = scmp.eq.s32.totalorder %s27, 0
    %p227 = por %p225, %p226
    %p228 = scmp.le.s32.totalorder 1, %s21
    %p229 = scmp.lt.s32.totalorder %s21, 3
    %p230 = pnand %p228, %p229
    %p231 = pneg %p230
    // Predicated region
    $region9: #{glca_forward.1} parent=5 // pred_check
      _
    $region10: #{glca_forward.1} parent=5 // pred_check_branch
      %233 = sbr.rel (%p230) target = $region12
    $region11: #{glca_forward.1} parent=5 // pred_region
      %s234 = ssub.s32 %s21, 1
      // Predicated region
      $region13: #{glca_forward.1} parent=11 // pred_check
        %p235 = pneg %p68
      $region14: #{glca_forward.1} parent=11 // pred_check_branch
        %237 = sbr.rel (%p235) target = $region16
      $region15: #{glca_forward.1} parent=11 // pred_region
        _
      $region16: #{glca_forward.1} parent=11 // pred_fallthru
        _
      // Predicated region
      $region17: #{glca_forward.1} parent=11 // pred_check
        %p238 = pneg %p89
      $region18: #{glca_forward.1} parent=11 // pred_check_branch
        %240 = sbr.rel (%p238) target = $region20
      $region19: #{glca_forward.1} parent=11 // pred_region
        _
      $region20: #{glca_forward.1} parent=11 // pred_fallthru
        _
      // Predicated region
      $region21: #{glca_forward.1} parent=11 // pred_check
        %p241 = pneg %p110
      $region22: #{glca_forward.1} parent=11 // pred_check_branch
        %243 = sbr.rel (%p241) target = $region24
      $region23: #{glca_forward.1} parent=11 // pred_region
        _
      $region24: #{glca_forward.1} parent=11 // pred_fallthru
        _
      // Predicated region
      $region25: #{glca_forward.1} parent=11 // pred_check
        %p244 = pneg %p131
      $region26: #{glca_forward.1} parent=11 // pred_check_branch
        %246 = sbr.rel (%p244) target = $region28
      $region27: #{glca_forward.1} parent=11 // pred_region
        _
      $region28: #{glca_forward.1} parent=11 // pred_fallthru
        _
      // Predicated region
      $region29: #{glca_forward.1} parent=11 // pred_check
        %p247 = pneg %p152
      $region30: #{glca_forward.1} parent=11 // pred_check_branch
        %249 = sbr.rel (%p247) target = $region32
      $region31: #{glca_forward.1} parent=11 // pred_region
        _
      $region32: #{glca_forward.1} parent=11 // pred_fallthru
        _
      // Predicated region
      $region33: #{glca_forward.1} parent=11 // pred_check
        %p250 = pneg %p173
      $region34: #{glca_forward.1} parent=11 // pred_check_branch
        %252 = sbr.rel (%p250) target = $region36
      $region35: #{glca_forward.1} parent=11 // pred_region
        _
      $region36: #{glca_forward.1} parent=11 // pred_fallthru
        _
      // Predicated region
      $region37: #{glca_forward.1} parent=11 // pred_check
        %p253 = pneg %p194
      $region38: #{glca_forward.1} parent=11 // pred_check_branch
        %255 = sbr.rel (%p253) target = $region40
      $region39: #{glca_forward.1} parent=11 // pred_region
        _
      $region40: #{glca_forward.1} parent=11 // pred_fallthru
        _
    $region12: #{glca_forward.1} parent=5 // pred_fallthru
      _
    %p256 = scmp.lt.s32.totalorder %s21, 2
    // Predicated region
    $region41: #{glca_forward.1} parent=5 // pred_check
      %p257 = pneg %p256
    $region42: #{glca_forward.1} parent=5 // pred_check_branch
      %259 = sbr.rel (%p257) target = $region44
    $region43: #{glca_forward.1} parent=5 // pred_region
      // Predicated region
      $region45: #{glca_forward.1} parent=43 // pred_check
        %p260 = pneg %p41
      $region46: #{glca_forward.1} parent=43 // pred_check_branch
        %262 = sbr.rel (%p260) target = $region48
      $region47: #{glca_forward.1} parent=43 // pred_region
        %p263 = scmp.lt.s32.totalorder %s21, 1
        %s264 = scalar_select %p263, %s21, 1
        %s265 = smul.addr %s264, 3
        %s266 = smul.addr %s265, 8
        %s267 = scalar_lea.vmem %s1, %s266
      $region48: #{glca_forward.1} parent=43 // pred_fallthru
        _
    $region44: #{glca_forward.1} parent=5 // pred_fallthru
      _
    %p268 = scmp.le.s32.totalorder 1, %s21
    %p269 = scmp.lt.s32.totalorder %s21, 3
    %p270 = pnand %p268, %p269
    %p271 = pneg %p270
    // Predicated region
    $region49: #{glca_forward.1} parent=5 // pred_check
      _
    $region50: #{glca_forward.1} parent=5 // pred_check_branch
      %273 = sbr.rel (%p270) target = $region52
    $region51: #{glca_forward.1} parent=5 // pred_region
      %s274 = ssub.s32 %s21, 1
      %p275 = scmp.lt.s32.totalorder %s26, 1
      %s276 = scalar_select %p275, %s26, 1
      %s277 = smul.addr %s276, 3
      %s278 = smul.addr %s277, 8
      %s279 = scalar_lea.vmem %s1, %s278
      %p280 = pneg %p47
      %p281 = pneg %p44
      %p282 = pneg %p68
      %p283 = pneg %p65
      %p284 = pneg %p89
      %p285 = pneg %p86
      %p286 = pneg %p110
      %p287 = pneg %p107
      %p288 = pneg %p131
      %p289 = pneg %p128
      %p290 = pneg %p152
      %p291 = pneg %p149
      %p292 = pneg %p173
      %p293 = pneg %p170
      %p294 = pneg %p194
      %p295 = pneg %p191
      %p296 = pneg %p220
      %p297 = pneg %p217
      %p298 = scmp.lt.s32.totalorder %s26, 1
      %s299 = scalar_select %p298, %s26, 1
      %s300 = smul.addr %s299, 3
      %s301 = smul.addr %s300, 8
      %s302 = scalar_lea.vmem %s9, %s301
      %p303 = scmp.lt.s32.totalorder %s26, 1
      %s304 = scalar_select %p303, %s26, 1
      %s305 = smul.addr %s304, 3
      %s306 = smul.addr %s305, 8
      %s307 = scalar_lea.vmem %s1, %s306
      %p308 = scmp.lt.s32.totalorder %s26, 1
      %s309 = scalar_select %p308, %s26, 1
      %s310 = smul.addr %s309, 3
      %s311 = smul.addr %s310, 8
      %s312 = scalar_lea.vmem %s9, %s311
      %v314 = vld [vmem:[%s307] sm:$0xff]
      %v315 = vld [vmem:[%s307 + $0x8] sm:$0xff]
      %v316 = vld [vmem:[%s307 + $0x10] sm:$0x1]
      %v317 = vld [vmem:[%s2] sm:$0x1]
      %v318 = vld [vmem:[%s3] sm:$0x1]
      %vm319 = vcmask 261120
      %v320 = vsel %vm319, %v314, 0.0
      %321 = vadd.xlane.f32.xlu0 %v320
      %v322 = vpop.xlane.xlu0 %321
      %v323 = vsel %vm319, %v315, 0.0
      %324 = vadd.xlane.f32.xlu0 %v323
      %v325 = vpop.xlane.xlu0 %324
      %vm326 = vcmask 253952
      %v327 = vsel %vm326, %v316, 0.0
      %328 = vadd.xlane.f32.xlu0 %v327
      %v329 = vpop.xlane.xlu0 %328
      %v330 = vrcp.pop 32.0
      %v331 = vmul.f32 %v322, %v330
      %v332 = vmul.f32 %v325, %v330
      %v333 = vmul.f32 %v329, %v330
      %v334 = vsub.f32 %v314, %v331
      %v335 = vsub.f32 %v315, %v332
      %v336 = vsub.f32 %v316, %v333
      %v337 = vmul.f32 %v334, %v334
      %v338 = vmul.f32 %v335, %v335
      %v339 = vmul.f32 %v336, %v336
      %v340 = vsel %vm319, %v337, 0.0
      %341 = vadd.xlane.f32.xlu0 %v340
      %v342 = vpop.xlane.xlu0 %341
      %v343 = vsel %vm319, %v338, 0.0
      %344 = vadd.xlane.f32.xlu0 %v343
      %v345 = vpop.xlane.xlu0 %344
      %v346 = vsel %vm326, %v339, 0.0
      %347 = vadd.xlane.f32.xlu0 %v346
      %v348 = vpop.xlane.xlu0 %347
      %v349 = vmul.f32 %v342, %v330
      %v350 = vmul.f32 %v345, %v330
      %v351 = vmul.f32 %v348, %v330
      %v352 = vadd.f32 %v349, 1e-05
      %v353 = vadd.f32 %v350, 1e-05
      %v354 = vadd.f32 %v351, 1e-05
      %v355 = vrsqrt.pop %v352
      %v356 = vrsqrt.pop %v353
      %v357 = vrsqrt.pop %v354
      %v358 = vmul.f32 %v334, %v355
      %v359 = vmul.f32 %v335, %v356
      %v360 = vmul.f32 %v336, %v357
      %v362 = vlaneseq
      %v363 = vshrl.u32 %v362, 7
      %v364 = vsub.s32 0, %v363
      %v365 = vrot.slane %v317, %v364
      %v367 = vmul.f32 %v358, %v365
      %v368 = vmul.f32 %v359, %v365
      %v369 = vmul.f32 %v360, %v365
      %v371 = vlaneseq
      %v372 = vshrl.u32 %v371, 7
      %v373 = vsub.s32 0, %v372
      %v374 = vrot.slane %v318, %v373
      %v376 = vadd.f32 %v367, %v374
      %v377 = vadd.f32 %v368, %v374
      %v378 = vadd.f32 %v369, %v374
      %s379 = smul.u32 %s26, 128
      %s380 = sld [smem:[#allocation3 + %s379]]
      %s381 = scalar_lea.vmem %s307, %s380
      %v382 = vld [vmem:[%s381] sm:$0x1]
      %s383 = sadd.s32 %s379, 1
      %s384 = sld [smem:[#allocation3 + %s383]]
      %s385 = scalar_lea.vmem %s307, %s384
      %v386 = vld [vmem:[%s385] sm:$0x1]
      %s387 = sadd.s32 %s379, 2
      %s388 = sld [smem:[#allocation3 + %s387]]
      %s389 = scalar_lea.vmem %s307, %s388
      %v390 = vld [vmem:[%s389] sm:$0x1]
      %s391 = sadd.s32 %s379, 3
      %s392 = sld [smem:[#allocation3 + %s391]]
      %s393 = scalar_lea.vmem %s307, %s392
      %v394 = vld [vmem:[%s393] sm:$0x1]
      %v396 = vrot.slane %v386, 7
      %v399 = vrot.slane %v390, 6
      %v402 = vrot.slane %v394, 5
      %vm404 = vcmask 1040384
      %v405 = vsel %vm404, %v382, %v396
      %vm406 = vcmask 1041408
      %v407 = vsel %vm406, %v405, %v399
      %vm408 = vcmask 1042432
      %v409 = vsel %vm408, %v407, %v402
      %vm410 = vcmask 257024
      %v411 = vsel %vm410, %v409, 0.0
      %412 = vadd.xlane.f32.xlu0 %v411
      %v413 = vpop.xlane.xlu0 %412
      %v414 = vmul.f32 %v413, %v330
      %v415 = vsub.f32 %v409, %v414
      %v416 = vmul.f32 %v415, %v415
      %v417 = vsel %vm410, %v416, 0.0
      %418 = vadd.xlane.f32.xlu0 %v417
      %v419 = vpop.xlane.xlu0 %418
      %v420 = vmul.f32 %v419, %v330
      %v421 = vadd.f32 %v420, 1e-05
      %v422 = vrsqrt.pop %v421
      %v423 = vmul.f32 %v415, %v422
      %v424 = vmul.f32 %v423, %v365
      %v425 = vadd.f32 %v424, %v374
      %v426 = vpack.c.bf16 %v377, %v376
      %v427 = vpack.c.bf16 %v378, %v378
      %v428 = vpack.c.bf16 %v425, %v425
      %v429 = vld [vmem:[%s4] sm:$0xff]
      %v430 = vld [vmem:[%s4 + $0x8] sm:$0xff]
      %v431 = vld [vmem:[%s4 + $0x10] sm:$0xff]
      %v432 = vld [vmem:[%s4 + $0x18] sm:$0xff]
      %v433 = vpack.c.bf16 %v430, %v429
      %v434 = vpack.c.bf16 %v432, %v431
      %v436 = vsel %vm319, %v428, 0
      %438 = vmatprep.subr.bf16.mxu0 0
      %439 = vmatpush1.bf16.msra.mxu0 0
      %440 = vmatprep.subr.bf16.mxu0 0
      %441 = vmatpush1.bf16.msra.mxu0 0
      %442 = vmatprep.subr.bf16.mxu0 0
      %443 = vmatpush1.bf16.msra.mxu0 0
      %444 = vmatprep.subr.bf16.mxu0 0
      %445 = vmatpush1.bf16.msra.mxu0 0
      %446 = vmatprep.subr.bf16.mxu0 0
      %447 = vmatpush1.bf16.msra.mxu0 0
      %448 = vmatprep.subr.bf16.mxu0 0
      %449 = vmatpush1.bf16.msra.mxu0 0
      %450 = vmatprep.subr.bf16.mxu0 0
      %451 = vmatpush1.bf16.msra.mxu0 %v434
      %452 = vmatprep.subr.bf16.mxu0 0
      %453 = vmatpush1.bf16.msra.mxu0 %v433
      %454 = vmatprep.subr.bf16.mxu0 0
      %455 = vmatpush2.bf16.msra.mxu0 0
      %456 = vmatprep.subr.bf16.mxu0 0
      %457 = vmatpush2.bf16.msra.mxu0 0
      %458 = vmatprep.subr.bf16.mxu0 0
      %459 = vmatpush2.bf16.msra.mxu0 0
      %460 = vmatprep.subr.bf16.mxu0 0
      %461 = vmatpush2.bf16.msra.mxu0 0
      %462 = vmatprep.subr.bf16.mxu0 0
      %463 = vmatpush2.bf16.msra.mxu0 0
      %464 = vmatprep.subr.bf16.mxu0 0
      %465 = vmatpush2.bf16.msra.mxu0 0
      %466 = vmatprep.subr.bf16.mxu0 0
      %467 = vmatpush2.bf16.msra.mxu0 0
      %468 = vmatprep.subr.bf16.mxu0 0
      %469 = vmatpush2.bf16.msra.mxu0 0
      %470 = vmatprep.mubr.bf16.mxu0 0
      %471 = vmatmul.mubr.bf16.gmra.mxu0 %v436
      %v472 = vpop.f32.mrf.mxu0
      %v473 = vadd.f32 0.0, %v472
      %v474 = vpop.f32.mrf.mxu0
      %v475 = vpop.f32.mrf.mxu0
      %v476 = vpop.f32.mrf.mxu0
      %477 = vdwg.mxu0
      %v478 = vld [vmem:[%s5] sm:$0xff]
      %v479 = vld [vmem:[%s5 + $0x8] sm:$0xff]
      %v480 = vld [vmem:[%s5 + $0x10] sm:$0xff]
      %v481 = vld [vmem:[%s5 + $0x18] sm:$0xff]
      %v482 = vpack.c.bf16 %v479, %v478
      %v483 = vpack.c.bf16 %v481, %v480
      %v485 = vsel %vm319, %v426, 0
      %v488 = vsel %vm319, %v427, 0
      %490 = vmatprep.subr.bf16.mxu0 0
      %491 = vmatpush1.bf16.msra.mxu0 0
      %492 = vmatprep.subr.bf16.mxu0 0
      %493 = vmatpush1.bf16.msra.mxu0 0
      %494 = vmatprep.subr.bf16.mxu0 0
      %495 = vmatpush1.bf16.msra.mxu0 0
      %496 = vmatprep.subr.bf16.mxu0 0
      %497 = vmatpush1.bf16.msra.mxu0 0
      %498 = vmatprep.subr.bf16.mxu0 0
      %499 = vmatpush1.bf16.msra.mxu0 0
      %500 = vmatprep.subr.bf16.mxu0 0
      %501 = vmatpush1.bf16.msra.mxu0 0
      %502 = vmatprep.subr.bf16.mxu0 0
      %503 = vmatpush1.bf16.msra.mxu0 %v483
      %504 = vmatprep.subr.bf16.mxu0 0
      %505 = vmatpush1.bf16.msra.mxu0 %v482
      %506 = vmatprep.subr.bf16.mxu0 0
      %507 = vmatpush2.bf16.msra.mxu0 0
      %508 = vmatprep.subr.bf16.mxu0 0
      %509 = vmatpush2.bf16.msra.mxu0 0
      %510 = vmatprep.subr.bf16.mxu0 0
      %511 = vmatpush2.bf16.msra.mxu0 0
      %512 = vmatprep.subr.bf16.mxu0 0
      %513 = vmatpush2.bf16.msra.mxu0 0
      %514 = vmatprep.subr.bf16.mxu0 0
      %515 = vmatpush2.bf16.msra.mxu0 0
      %516 = vmatprep.subr.bf16.mxu0 0
      %517 = vmatpush2.bf16.msra.mxu0 0
      %518 = vmatprep.subr.bf16.mxu0 0
      %519 = vmatpush2.bf16.msra.mxu0 0
      %520 = vmatprep.subr.bf16.mxu0 0
      %521 = vmatpush2.bf16.msra.mxu0 0
      %522 = vmatprep.mubr.bf16.mxu0 0
      %523 = vmatmul.mubr.bf16.gmra.mxu0 %v485
      %v524 = vpop.f32.mrf.mxu0
      %v525 = vadd.f32 0.0, %v524
      %v526 = vpop.f32.mrf.mxu0
      %v527 = vpop.f32.mrf.mxu0
      %v528 = vadd.f32 0.0, %v527
      %v529 = vpop.f32.mrf.mxu0
      %530 = vmatprep.mubr.bf16.mxu0 0
      %531 = vmatmul.mubr.bf16.gmra.mxu0 %v488
      %v532 = vpop.f32.mrf.mxu0
      %v533 = vadd.f32 0.0, %v532
      %v534 = vpop.f32.mrf.mxu0
      %v535 = vpop.f32.mrf.mxu0
      %v536 = vpop.f32.mrf.mxu0
      %537 = vdwg.mxu0
      %v538 = vld [vmem:[%s6] sm:$0xff]
      %v539 = vld [vmem:[%s6 + $0x8] sm:$0xff]
      %v540 = vld [vmem:[%s6 + $0x10] sm:$0xff]
      %v541 = vld [vmem:[%s6 + $0x18] sm:$0xff]
      %v542 = vpack.c.bf16 %v539, %v538
      %v543 = vpack.c.bf16 %v541, %v540
      %544 = vmatprep.subr.bf16.mxu0 0
      %545 = vmatpush1.bf16.msra.mxu0 0
      %546 = vmatprep.subr.bf16.mxu0 0
      %547 = vmatpush1.bf16.msra.mxu0 0
      %548 = vmatprep.subr.bf16.mxu0 0
      %549 = vmatpush1.bf16.msra.mxu0 0
      %550 = vmatprep.subr.bf16.mxu0 0
      %551 = vmatpush1.bf16.msra.mxu0 0
      %552 = vmatprep.subr.bf16.mxu0 0
      %553 = vmatpush1.bf16.msra.mxu0 0
      %554 = vmatprep.subr.bf16.mxu0 0
      %555 = vmatpush1.bf16.msra.mxu0 0
      %556 = vmatprep.subr.bf16.mxu0 0
      %557 = vmatpush1.bf16.msra.mxu0 %v543
      %558 = vmatprep.subr.bf16.mxu0 0
      %559 = vmatpush1.bf16.msra.mxu0 %v542
      %560 = vmatprep.subr.bf16.mxu0 0
      %561 = vmatpush2.bf16.msra.mxu0 0
      %562 = vmatprep.subr.bf16.mxu0 0
      %563 = vmatpush2.bf16.msra.mxu0 0
      %564 = vmatprep.subr.bf16.mxu0 0
      %565 = vmatpush2.bf16.msra.mxu0 0
      %566 = vmatprep.subr.bf16.mxu0 0
      %567 = vmatpush2.bf16.msra.mxu0 0
      %568 = vmatprep.subr.bf16.mxu0 0
      %569 = vmatpush2.bf16.msra.mxu0 0
      %570 = vmatprep.subr.bf16.mxu0 0
      %571 = vmatpush2.bf16.msra.mxu0 0
      %572 = vmatprep.subr.bf16.mxu0 0
      %573 = vmatpush2.bf16.msra.mxu0 0
      %574 = vmatprep.subr.bf16.mxu0 0
      %575 = vmatpush2.bf16.msra.mxu0 0
      %576 = vmatprep.mubr.bf16.mxu0 0
      %577 = vmatmul.mubr.bf16.gmra.mxu0 %v485
      %v578 = vpop.f32.mrf.mxu0
      %v579 = vadd.f32 0.0, %v578
      %v580 = vpop.f32.mrf.mxu0
      %v581 = vpop.f32.mrf.mxu0
      %v582 = vadd.f32 0.0, %v581
      %v583 = vpop.f32.mrf.mxu0
      %584 = vmatprep.mubr.bf16.mxu0 0
      %585 = vmatmul.mubr.bf16.gmra.mxu0 %v488
      %v586 = vpop.f32.mrf.mxu0
      %v587 = vadd.f32 0.0, %v586
      %v588 = vpop.f32.mrf.mxu0
      %v589 = vpop.f32.mrf.mxu0
      %v590 = vpop.f32.mrf.mxu0
      %591 = vdwg.mxu0
      %v592 = vpack.c.bf16 %v473, %v473
      %v593 = vpack.c.bf16 %v528, %v525
      %v594 = vpack.c.bf16 %v533, %v533
      %v595 = vpack.c.bf16 %v582, %v579
      %v596 = vpack.c.bf16 %v587, %v587
      %vm597 = vcmask 64512
      %v599 = vsel %vm597, %v592, 0
      %v602 = vsel %vm597, %v593, 0
      %v605 = vsel %vm597, %v594, 0
      %607 = vmatprep.subr.bf16.mxu0 0
      %608 = vmatpush1.bf16.xpose.msra.mxu0 0
      %609 = vmatprep.subr.bf16.mxu0 0
      %610 = vmatpush1.bf16.xpose.msra.mxu0 0
      %611 = vmatprep.subr.bf16.mxu0 0
      %612 = vmatpush1.bf16.xpose.msra.mxu0 0
      %613 = vmatprep.subr.bf16.mxu0 0
      %614 = vmatpush1.bf16.xpose.msra.mxu0 0
      %615 = vmatprep.subr.bf16.mxu0 0
      %616 = vmatpush1.bf16.xpose.msra.mxu0 0
      %617 = vmatprep.subr.bf16.mxu0 0
      %618 = vmatpush1.bf16.xpose.msra.mxu0 0
      %619 = vmatprep.subr.bf16.mxu0 0
      %620 = vmatpush1.bf16.xpose.msra.mxu0 %v605
      %621 = vmatprep.subr.bf16.mxu0 0
      %622 = vmatpush1.bf16.xpose.msra.mxu0 %v602
      %623 = vmatprep.subr.bf16.mxu0 0
      %624 = vmatpush2.bf16.xpose.msra.mxu0 0
      %625 = vmatprep.subr.bf16.mxu0 0
      %626 = vmatpush2.bf16.xpose.msra.mxu0 0
      %627 = vmatprep.subr.bf16.mxu0 0
      %628 = vmatpush2.bf16.xpose.msra.mxu0 0
      %629 = vmatprep.subr.bf16.mxu0 0
      %630 = vmatpush2.bf16.xpose.msra.mxu0 0
      %631 = vmatprep.subr.bf16.mxu0 0
      %632 = vmatpush2.bf16.xpose.msra.mxu0 0
      %633 = vmatprep.subr.bf16.mxu0 0
      %634 = vmatpush2.bf16.xpose.msra.mxu0 0
      %635 = vmatprep.subr.bf16.mxu0 0
      %636 = vmatpush2.bf16.xpose.msra.mxu0 0
      %637 = vmatprep.subr.bf16.mxu0 0
      %638 = vmatpush2.bf16.xpose.msra.mxu0 0
      %639 = vmatprep.mubr.bf16.mxu0 0
      %640 = vmatmul.mubr.bf16.gmra.mxu0 %v599
      %v641 = vpop.f32.mrf.mxu0
      %v642 = vadd.f32 0.0, %v641
      %v643 = vpop.f32.mrf.mxu0
      %v644 = vpop.f32.mrf.mxu0
      %v645 = vpop.f32.mrf.mxu0
      %646 = vdwg.mxu0
      %vm647 = vcmask 134144
      %v648 = vsel %vm647, %v642, -inf
      %649 = vmax.xlane.f32.xlu0 %v648
      %v650 = vpop.xlane.xlu0 %649
      %v651 = vsub.f32 %v642, %v650
      %v652 = vmul.f32 %v651, 1.442695
      %v653 = vpow.pop %v652
      %v654 = vsel %vm647, %v653, 0.0
      %655 = vadd.xlane.f32.xlu0 %v654
      %v656 = vpop.xlane.xlu0 %655
      %v657 = vrcp.pop %v656
      %v658 = vmul.f32 %v653, %v657
      %v659 = vpack.c.bf16 %v658, %v658
      %vm660 = vcmask 138240
      %v662 = vsel %vm660, %v659, 0
      %v664 = vsel 0, 4294967295, 65535
      %v665 = vsel %vm404, %v664, 0
      %v667 = vand.u32 %v596, %v665
      %669 = vmatprep.subr.bf16.mxu0 0
      %670 = vmatpush1.bf16.msra.mxu0 0
      %671 = vmatprep.subr.bf16.mxu0 0
      %672 = vmatpush1.bf16.msra.mxu0 0
      %673 = vmatprep.subr.bf16.mxu0 0
      %674 = vmatpush1.bf16.msra.mxu0 0
      %675 = vmatprep.subr.bf16.mxu0 0
      %676 = vmatpush1.bf16.msra.mxu0 0
      %677 = vmatprep.subr.bf16.mxu0 0
      %678 = vmatpush1.bf16.msra.mxu0 0
      %679 = vmatprep.subr.bf16.mxu0 0
      %680 = vmatpush1.bf16.msra.mxu0 0
      %681 = vmatprep.subr.bf16.mxu0 0
      %682 = vmatpush1.bf16.msra.mxu0 %v667
      %683 = vmatprep.subr.bf16.mxu0 0
      %684 = vmatpush1.bf16.msra.mxu0 %v595
      %685 = vmatprep.subr.bf16.mxu0 0
      %686 = vmatpush2.bf16.msra.mxu0 0
      %687 = vmatprep.subr.bf16.mxu0 0
      %688 = vmatpush2.bf16.msra.mxu0 0
      %689 = vmatprep.subr.bf16.mxu0 0
      %690 = vmatpush2.bf16.msra.mxu0 0
      %691 = vmatprep.subr.bf16.mxu0 0
      %692 = vmatpush2.bf16.msra.mxu0 0
      %693 = vmatprep.subr.bf16.mxu0 0
      %694 = vmatpush2.bf16.msra.mxu0 0
      %695 = vmatprep.subr.bf16.mxu0 0
      %696 = vmatpush2.bf16.msra.mxu0 0
      %697 = vmatprep.subr.bf16.mxu0 0
      %698 = vmatpush2.bf16.msra.mxu0 0
      %699 = vmatprep.subr.bf16.mxu0 0
      %700 = vmatpush2.bf16.msra.mxu0 0
      %701 = vmatprep.mubr.bf16.mxu0 0
      %702 = vmatmul.mubr.bf16.gmra.mxu0 %v662
      %v703 = vpop.f32.mrf.mxu0
      %v704 = vadd.f32 0.0, %v703
      %v705 = vpop.f32.mrf.mxu0
      %v706 = vpop.f32.mrf.mxu0
      %v707 = vpop.f32.mrf.mxu0
      %708 = vdwg.mxu0
      %710 = vrot.lane.b32.xlu0 %v592, 120
      %v711 = vpop.permute.xlu0 %710
      %714 = vrot.lane.b32.xlu0 %v593, 120
      %v715 = vpop.permute.xlu0 %714
      %716 = vrot.lane.b32.xlu0 %v594, 120
      %v717 = vpop.permute.xlu0 %716
      %v719 = vsel %vm597, %v711, 0
      %v722 = vsel %vm597, %v715, 0
      %v725 = vsel %vm597, %v717, 0
      %727 = vmatprep.subr.bf16.mxu0 0
      %728 = vmatpush1.bf16.xpose.msra.mxu0 0
      %729 = vmatprep.subr.bf16.mxu0 0
      %730 = vmatpush1.bf16.xpose.msra.mxu0 0
      %731 = vmatprep.subr.bf16.mxu0 0
      %732 = vmatpush1.bf16.xpose.msra.mxu0 0
      %733 = vmatprep.subr.bf16.mxu0 0
      %734 = vmatpush1.bf16.xpose.msra.mxu0 0
      %735 = vmatprep.subr.bf16.mxu0 0
      %736 = vmatpush1.bf16.xpose.msra.mxu0 0
      %737 = vmatprep.subr.bf16.mxu0 0
      %738 = vmatpush1.bf16.xpose.msra.mxu0 0
      %739 = vmatprep.subr.bf16.mxu0 0
      %740 = vmatpush1.bf16.xpose.msra.mxu0 %v725
      %741 = vmatprep.subr.bf16.mxu0 0
      %742 = vmatpush1.bf16.xpose.msra.mxu0 %v722
      %743 = vmatprep.subr.bf16.mxu0 0
      %744 = vmatpush2.bf16.xpose.msra.mxu0 0
      %745 = vmatprep.subr.bf16.mxu0 0
      %746 = vmatpush2.bf16.xpose.msra.mxu0 0
      %747 = vmatprep.subr.bf16.mxu0 0
      %748 = vmatpush2.bf16.xpose.msra.mxu0 0
      %749 = vmatprep.subr.bf16.mxu0 0
      %750 = vmatpush2.bf16.xpose.msra.mxu0 0
      %751 = vmatprep.subr.bf16.mxu0 0
      %752 = vmatpush2.bf16.xpose.msra.mxu0 0
      %753 = vmatprep.subr.bf16.mxu0 0
      %754 = vmatpush2.bf16.xpose.msra.mxu0 0
      %755 = vmatprep.subr.bf16.mxu0 0
      %756 = vmatpush2.bf16.xpose.msra.mxu0 0
      %757 = vmatprep.subr.bf16.mxu0 0
      %758 = vmatpush2.bf16.xpose.msra.mxu0 0
      %759 = vmatprep.mubr.bf16.mxu0 0
      %760 = vmatmul.mubr.bf16.gmra.mxu0 %v719
      %v761 = vpop.f32.mrf.mxu0
      %v762 = vadd.f32 0.0, %v761
      %v763 = vpop.f32.mrf.mxu0
      %v764 = vpop.f32.mrf.mxu0
      %v765 = vpop.f32.mrf.mxu0
      %766 = vdwg.mxu0
      %v767 = vsel %vm647, %v762, -inf
      %768 = vmax.xlane.f32.xlu0 %v767
      %v769 = vpop.xlane.xlu0 %768
      %v770 = vsub.f32 %v762, %v769
      %v771 = vmul.f32 %v770, 1.442695
      %v772 = vpow.pop %v771
      %v773 = vsel %vm647, %v772, 0.0
      %774 = vadd.xlane.f32.xlu0 %v773
      %v775 = vpop.xlane.xlu0 %774
      %v776 = vrcp.pop %v775
      %v777 = vmul.f32 %v772, %v776
      %v778 = vpack.c.bf16 %v777, %v777
      %781 = vrot.lane.b32.xlu0 %v595, 120
      %v782 = vpop.permute.xlu0 %781
      %783 = vrot.lane.b32.xlu0 %v596, 120
      %v784 = vpop.permute.xlu0 %783
      %v787 = vsel %vm660, %v778, 0
      %v790 = vand.u32 %v784, %v665
      %792 = vmatprep.subr.bf16.mxu0 0
      %793 = vmatpush1.bf16.msra.mxu0 0
      %794 = vmatprep.subr.bf16.mxu0 0
      %795 = vmatpush1.bf16.msra.mxu0 0
      %796 = vmatprep.subr.bf16.mxu0 0
      %797 = vmatpush1.bf16.msra.mxu0 0
      %798 = vmatprep.subr.bf16.mxu0 0
      %799 = vmatpush1.bf16.msra.mxu0 0
      %800 = vmatprep.subr.bf16.mxu0 0
      %801 = vmatpush1.bf16.msra.mxu0 0
      %802 = vmatprep.subr.bf16.mxu0 0
      %803 = vmatpush1.bf16.msra.mxu0 0
      %804 = vmatprep.subr.bf16.mxu0 0
      %805 = vmatpush1.bf16.msra.mxu0 %v790
      %806 = vmatprep.subr.bf16.mxu0 0
      %807 = vmatpush1.bf16.msra.mxu0 %v782
      %808 = vmatprep.subr.bf16.mxu0 0
      %809 = vmatpush2.bf16.msra.mxu0 0
      %810 = vmatprep.subr.bf16.mxu0 0
      %811 = vmatpush2.bf16.msra.mxu0 0
      %812 = vmatprep.subr.bf16.mxu0 0
      %813 = vmatpush2.bf16.msra.mxu0 0
      %814 = vmatprep.subr.bf16.mxu0 0
      %815 = vmatpush2.bf16.msra.mxu0 0
      %816 = vmatprep.subr.bf16.mxu0 0
      %817 = vmatpush2.bf16.msra.mxu0 0
      %818 = vmatprep.subr.bf16.mxu0 0
      %819 = vmatpush2.bf16.msra.mxu0 0
      %820 = vmatprep.subr.bf16.mxu0 0
      %821 = vmatpush2.bf16.msra.mxu0 0
      %822 = vmatprep.subr.bf16.mxu0 0
      %823 = vmatpush2.bf16.msra.mxu0 0
      %824 = vmatprep.mubr.bf16.mxu0 0
      %825 = vmatmul.mubr.bf16.gmra.mxu0 %v787
      %v826 = vpop.f32.mrf.mxu0
      %v827 = vadd.f32 0.0, %v826
      %v828 = vpop.f32.mrf.mxu0
      %v829 = vpop.f32.mrf.mxu0
      %v830 = vpop.f32.mrf.mxu0
      %831 = vdwg.mxu0
      %832 = vrot.lane.b32.xlu0 %v592, 112
      %v833 = vpop.permute.xlu0 %832
      %834 = vrot.lane.b32.xlu0 %v593, 112
      %v835 = vpop.permute.xlu0 %834
      %836 = vrot.lane.b32.xlu0 %v594, 112
      %v837 = vpop.permute.xlu0 %836
      %v839 = vsel %vm597, %v833, 0
      %v842 = vsel %vm597, %v835, 0
      %v845 = vsel %vm597, %v837, 0
      %847 = vmatprep.subr.bf16.mxu0 0
      %848 = vmatpush1.bf16.xpose.msra.mxu0 0
      %849 = vmatprep.subr.bf16.mxu0 0
      %850 = vmatpush1.bf16.xpose.msra.mxu0 0
      %851 = vmatprep.subr.bf16.mxu0 0
      %852 = vmatpush1.bf16.xpose.msra.mxu0 0
      %853 = vmatprep.subr.bf16.mxu0 0
      %854 = vmatpush1.bf16.xpose.msra.mxu0 0
      %855 = vmatprep.subr.bf16.mxu0 0
      %856 = vmatpush1.bf16.xpose.msra.mxu0 0
      %857 = vmatprep.subr.bf16.mxu0 0
      %858 = vmatpush1.bf16.xpose.msra.mxu0 0
      %859 = vmatprep.subr.bf16.mxu0 0
      %860 = vmatpush1.bf16.xpose.msra.mxu0 %v845
      %861 = vmatprep.subr.bf16.mxu0 0
      %862 = vmatpush1.bf16.xpose.msra.mxu0 %v842
      %863 = vmatprep.subr.bf16.mxu0 0
      %864 = vmatpush2.bf16.xpose.msra.mxu0 0
      %865 = vmatprep.subr.bf16.mxu0 0
      %866 = vmatpush2.bf16.xpose.msra.mxu0 0
      %867 = vmatprep.subr.bf16.mxu0 0
      %868 = vmatpush2.bf16.xpose.msra.mxu0 0
      %869 = vmatprep.subr.bf16.mxu0 0
      %870 = vmatpush2.bf16.xpose.msra.mxu0 0
      %871 = vmatprep.subr.bf16.mxu0 0
      %872 = vmatpush2.bf16.xpose.msra.mxu0 0
      %873 = vmatprep.subr.bf16.mxu0 0
      %874 = vmatpush2.bf16.xpose.msra.mxu0 0
      %875 = vmatprep.subr.bf16.mxu0 0
      %876 = vmatpush2.bf16.xpose.msra.mxu0 0
      %877 = vmatprep.subr.bf16.mxu0 0
      %878 = vmatpush2.bf16.xpose.msra.mxu0 0
      %879 = vmatprep.mubr.bf16.mxu0 0
      %880 = vmatmul.mubr.bf16.gmra.mxu0 %v839
      %v881 = vpop.f32.mrf.mxu0
      %v882 = vadd.f32 0.0, %v881
      %v883 = vpop.f32.mrf.mxu0
      %v884 = vpop.f32.mrf.mxu0
      %v885 = vpop.f32.mrf.mxu0
      %886 = vdwg.mxu0
      %v887 = vsel %vm647, %v882, -inf
      %888 = vmax.xlane.f32.xlu0 %v887
      %v889 = vpop.xlane.xlu0 %888
      %v890 = vsub.f32 %v882, %v889
      %v891 = vmul.f32 %v890, 1.442695
      %v892 = vpow.pop %v891
      %v893 = vsel %vm647, %v892, 0.0
      %894 = vadd.xlane.f32.xlu0 %v893
      %v895 = vpop.xlane.xlu0 %894
      %v896 = vrcp.pop %v895
      %v897 = vmul.f32 %v892, %v896
      %v898 = vpack.c.bf16 %v897, %v897
      %899 = vrot.lane.b32.xlu0 %v595, 112
      %v900 = vpop.permute.xlu0 %899
      %901 = vrot.lane.b32.xlu0 %v596, 112
      %v902 = vpop.permute.xlu0 %901
      %v905 = vsel %vm660, %v898, 0
      %v908 = vand.u32 %v902, %v665
      %910 = vmatprep.subr.bf16.mxu0 0
      %911 = vmatpush1.bf16.msra.mxu0 0
      %912 = vmatprep.subr.bf16.mxu0 0
      %913 = vmatpush1.bf16.msra.mxu0 0
      %914 = vmatprep.subr.bf16.mxu0 0
      %915 = vmatpush1.bf16.msra.mxu0 0
      %916 = vmatprep.subr.bf16.mxu0 0
      %917 = vmatpush1.bf16.msra.mxu0 0
      %918 = vmatprep.subr.bf16.mxu0 0
      %919 = vmatpush1.bf16.msra.mxu0 0
      %920 = vmatprep.subr.bf16.mxu0 0
      %921 = vmatpush1.bf16.msra.mxu0 0
      %922 = vmatprep.subr.bf16.mxu0 0
      %923 = vmatpush1.bf16.msra.mxu0 %v908
      %924 = vmatprep.subr.bf16.mxu0 0
      %925 = vmatpush1.bf16.msra.mxu0 %v900
      %926 = vmatprep.subr.bf16.mxu0 0
      %927 = vmatpush2.bf16.msra.mxu0 0
      %928 = vmatprep.subr.bf16.mxu0 0
      %929 = vmatpush2.bf16.msra.mxu0 0
      %930 = vmatprep.subr.bf16.mxu0 0
      %931 = vmatpush2.bf16.msra.mxu0 0
      %932 = vmatprep.subr.bf16.mxu0 0
      %933 = vmatpush2.bf16.msra.mxu0 0
      %934 = vmatprep.subr.bf16.mxu0 0
      %935 = vmatpush2.bf16.msra.mxu0 0
      %936 = vmatprep.subr.bf16.mxu0 0
      %937 = vmatpush2.bf16.msra.mxu0 0
      %938 = vmatprep.subr.bf16.mxu0 0
      %939 = vmatpush2.bf16.msra.mxu0 0
      %940 = vmatprep.subr.bf16.mxu0 0
      %941 = vmatpush2.bf16.msra.mxu0 0
      %942 = vmatprep.mubr.bf16.mxu0 0
      %943 = vmatmul.mubr.bf16.gmra.mxu0 %v905
      %v944 = vpop.f32.mrf.mxu0
      %v945 = vadd.f32 0.0, %v944
      %v946 = vpop.f32.mrf.mxu0
      %v947 = vpop.f32.mrf.mxu0
      %v948 = vpop.f32.mrf.mxu0
      %949 = vdwg.mxu0
      %950 = vrot.lane.b32.xlu0 %v592, 104
      %v951 = vpop.permute.xlu0 %950
      %952 = vrot.lane.b32.xlu0 %v593, 104
      %v953 = vpop.permute.xlu0 %952
      %954 = vrot.lane.b32.xlu0 %v594, 104
      %v955 = vpop.permute.xlu0 %954
      %v957 = vsel %vm597, %v951, 0
      %v960 = vsel %vm597, %v953, 0
      %v963 = vsel %vm597, %v955, 0
      %965 = vmatprep.subr.bf16.mxu0 0
      %966 = vmatpush1.bf16.xpose.msra.mxu0 0
      %967 = vmatprep.subr.bf16.mxu0 0
      %968 = vmatpush1.bf16.xpose.msra.mxu0 0
      %969 = vmatprep.subr.bf16.mxu0 0
      %970 = vmatpush1.bf16.xpose.msra.mxu0 0
      %971 = vmatprep.subr.bf16.mxu0 0
      %972 = vmatpush1.bf16.xpose.msra.mxu0 0
      %973 = vmatprep.subr.bf16.mxu0 0
      %974 = vmatpush1.bf16.xpose.msra.mxu0 0
      %975 = vmatprep.subr.bf16.mxu0 0
      %976 = vmatpush1.bf16.xpose.msra.mxu0 0
      %977 = vmatprep.subr.bf16.mxu0 0
      %978 = vmatpush1.bf16.xpose.msra.mxu0 %v963
      %979 = vmatprep.subr.bf16.mxu0 0
      %980 = vmatpush1.bf16.xpose.msra.mxu0 %v960
      %981 = vmatprep.subr.bf16.mxu0 0
      %982 = vmatpush2.bf16.xpose.msra.mxu0 0
      %983 = vmatprep.subr.bf16.mxu0 0
      %984 = vmatpush2.bf16.xpose.msra.mxu0 0
      %985 = vmatprep.subr.bf16.mxu0 0
      %986 = vmatpush2.bf16.xpose.msra.mxu0 0
      %987 = vmatprep.subr.bf16.mxu0 0
      %988 = vmatpush2.bf16.xpose.msra.mxu0 0
      %989 = vmatprep.subr.bf16.mxu0 0
      %990 = vmatpush2.bf16.xpose.msra.mxu0 0
      %991 = vmatprep.subr.bf16.mxu0 0
      %992 = vmatpush2.bf16.xpose.msra.mxu0 0
      %993 = vmatprep.subr.bf16.mxu0 0
      %994 = vmatpush2.bf16.xpose.msra.mxu0 0
      %995 = vmatprep.subr.bf16.mxu0 0
      %996 = vmatpush2.bf16.xpose.msra.mxu0 0
      %997 = vmatprep.mubr.bf16.mxu0 0
      %998 = vmatmul.mubr.bf16.gmra.mxu0 %v957
      %v999 = vpop.f32.mrf.mxu0
      %v1000 = vadd.f32 0.0, %v999
      %v1001 = vpop.f32.mrf.mxu0
      %v1002 = vpop.f32.mrf.mxu0
      %v1003 = vpop.f32.mrf.mxu0
      %1004 = vdwg.mxu0
      %v1005 = vsel %vm647, %v1000, -inf
      %1006 = vmax.xlane.f32.xlu0 %v1005
      %v1007 = vpop.xlane.xlu0 %1006
      %v1008 = vsub.f32 %v1000, %v1007
      %v1009 = vmul.f32 %v1008, 1.442695
      %v1010 = vpow.pop %v1009
      %v1011 = vsel %vm647, %v1010, 0.0
      %1012 = vadd.xlane.f32.xlu0 %v1011
      %v1013 = vpop.xlane.xlu0 %1012
      %v1014 = vrcp.pop %v1013
      %v1015 = vmul.f32 %v1010, %v1014
      %v1016 = vpack.c.bf16 %v1015, %v1015
      %1017 = vrot.lane.b32.xlu0 %v595, 104
      %v1018 = vpop.permute.xlu0 %1017
      %1019 = vrot.lane.b32.xlu0 %v596, 104
      %v1020 = vpop.permute.xlu0 %1019
      %v1023 = vsel %vm660, %v1016, 0
      %v1026 = vand.u32 %v1020, %v665
      %1028 = vmatprep.subr.bf16.mxu0 0
      %1029 = vmatpush1.bf16.msra.mxu0 0
      %1030 = vmatprep.subr.bf16.mxu0 0
      %1031 = vmatpush1.bf16.msra.mxu0 0
      %1032 = vmatprep.subr.bf16.mxu0 0
      %1033 = vmatpush1.bf16.msra.mxu0 0
      %1034 = vmatprep.subr.bf16.mxu0 0
      %1035 = vmatpush1.bf16.msra.mxu0 0
      %1036 = vmatprep.subr.bf16.mxu0 0
      %1037 = vmatpush1.bf16.msra.mxu0 0
      %1038 = vmatprep.subr.bf16.mxu0 0
      %1039 = vmatpush1.bf16.msra.mxu0 0
      %1040 = vmatprep.subr.bf16.mxu0 0
      %1041 = vmatpush1.bf16.msra.mxu0 %v1026
      %1042 = vmatprep.subr.bf16.mxu0 0
      %1043 = vmatpush1.bf16.msra.mxu0 %v1018
      %1044 = vmatprep.subr.bf16.mxu0 0
      %1045 = vmatpush2.bf16.msra.mxu0 0
      %1046 = vmatprep.subr.bf16.mxu0 0
      %1047 = vmatpush2.bf16.msra.mxu0 0
      %1048 = vmatprep.subr.bf16.mxu0 0
      %1049 = vmatpush2.bf16.msra.mxu0 0
      %1050 = vmatprep.subr.bf16.mxu0 0
      %1051 = vmatpush2.bf16.msra.mxu0 0
      %1052 = vmatprep.subr.bf16.mxu0 0
      %1053 = vmatpush2.bf16.msra.mxu0 0
      %1054 = vmatprep.subr.bf16.mxu0 0
      %1055 = vmatpush2.bf16.msra.mxu0 0
      %1056 = vmatprep.subr.bf16.mxu0 0
      %1057 = vmatpush2.bf16.msra.mxu0 0
      %1058 = vmatprep.subr.bf16.mxu0 0
      %1059 = vmatpush2.bf16.msra.mxu0 0
      %1060 = vmatprep.mubr.bf16.mxu0 0
      %1061 = vmatmul.mubr.bf16.gmra.mxu0 %v1023
      %v1062 = vpop.f32.mrf.mxu0
      %v1063 = vadd.f32 0.0, %v1062
      %v1064 = vpop.f32.mrf.mxu0
      %v1065 = vpop.f32.mrf.mxu0
      %v1066 = vpop.f32.mrf.mxu0
      %1067 = vdwg.mxu0
      %1069 = vrot.lane.b32.xlu0 %v827, 8
      %v1070 = vpop.permute.xlu0 %1069
      %1073 = vrot.lane.b32.xlu0 %v945, 16
      %v1074 = vpop.permute.xlu0 %1073
      %1077 = vrot.lane.b32.xlu0 %v1063, 24
      %v1078 = vpop.permute.xlu0 %1077
      %v1080 = vsel %vm597, %v704, %v1070
      %vm1081 = vcmask 130048
      %v1082 = vsel %vm1081, %v1080, %v1074
      %vm1083 = vcmask 195584
      %v1084 = vsel %vm1083, %v1082, %v1078
      %v1085 = vpack.c.bf16 %v1084, %v1084
      %v1086 = vld [vmem:[%s7] sm:$0xff]
      %v1087 = vld [vmem:[%s7 + $0x8] sm:$0xff]
      %v1088 = vld [vmem:[%s7 + $0x10] sm:$0xff]
      %v1089 = vld [vmem:[%s7 + $0x18] sm:$0xff]
      %v1090 = vpack.c.bf16 %v1087, %v1086
      %v1091 = vpack.c.bf16 %v1089, %v1088
      %v1092 = vld [vmem:[%s8] sm:$0x1]
      %v1094 = vlaneseq
      %v1095 = vshrl.u32 %v1094, 7
      %v1096 = vsub.s32 0, %v1095
      %v1097 = vrot.slane %v1092, %v1096
      %v1100 = vsel %vm319, %v1085, 0
      %1102 = vmatprep.subr.bf16.mxu0 0
      %1103 = vmatpush1.bf16.msra.mxu0 0
      %1104 = vmatprep.subr.bf16.mxu0 0
      %1105 = vmatpush1.bf16.msra.mxu0 0
      %1106 = vmatprep.subr.bf16.mxu0 0
      %1107 = vmatpush1.bf16.msra.mxu0 0
      %1108 = vmatprep.subr.bf16.mxu0 0
      %1109 = vmatpush1.bf16.msra.mxu0 0
      %1110 = vmatprep.subr.bf16.mxu0 0
      %1111 = vmatpush1.bf16.msra.mxu0 0
      %1112 = vmatprep.subr.bf16.mxu0 0
      %1113 = vmatpush1.bf16.msra.mxu0 0
      %1114 = vmatprep.subr.bf16.mxu0 0
      %1115 = vmatpush1.bf16.msra.mxu0 %v1091
      %1116 = vmatprep.subr.bf16.mxu0 0
      %1117 = vmatpush1.bf16.msra.mxu0 %v1090
      %1118 = vmatprep.subr.bf16.mxu0 0
      %1119 = vmatpush2.bf16.msra.mxu0 0
      %1120 = vmatprep.subr.bf16.mxu0 0
      %1121 = vmatpush2.bf16.msra.mxu0 0
      %1122 = vmatprep.subr.bf16.mxu0 0
      %1123 = vmatpush2.bf16.msra.mxu0 0
      %1124 = vmatprep.subr.bf16.mxu0 0
      %1125 = vmatpush2.bf16.msra.mxu0 0
      %1126 = vmatprep.subr.bf16.mxu0 0
      %1127 = vmatpush2.bf16.msra.mxu0 0
      %1128 = vmatprep.subr.bf16.mxu0 0
      %1129 = vmatpush2.bf16.msra.mxu0 0
      %1130 = vmatprep.subr.bf16.mxu0 0
      %1131 = vmatpush2.bf16.msra.mxu0 0
      %1132 = vmatprep.subr.bf16.mxu0 0
      %1133 = vmatpush2.bf16.msra.mxu0 0
      %1134 = vmatprep.mubr.bf16.mxu0 0
      %1135 = vmatmul.mubr.bf16.gmra.mxu0 %v1100
      %v1136 = vpop.f32.mrf.mxu0
      %v1137 = vadd.f32 %v1097, %v1136
      %v1138 = vpop.f32.mrf.mxu0
      %v1139 = vpop.f32.mrf.mxu0
      %v1140 = vpop.f32.mrf.mxu0
      %1141 = vdwg.mxu0
      %v1142 = vlaneseq
      %v1143 = vshrl.u32 %v1142, 7
      %v1144 = vadd.s32 %v1143, 8
      %v1145 = vadd.s32 %v1143, 16
      %v1146 = vstv %s380
      %vm1147 = vcmp.eq.s32.totalorder %v1143, %v1146
      %vm1148 = vcmp.eq.s32.totalorder %v1144, %v1146
      %vm1149 = vcmp.eq.s32.totalorder %v1145, %v1146
      %v1150 = vsel %vm1147, 1, 0
      %v1151 = vsel %vm1148, 1, 0
      %v1152 = vsel %vm1149, 1, 0
      %vm1153 = vcmp.eq.s32.totalorder %v1150, 1
      %vm1154 = vcmp.eq.s32.totalorder %v1151, 1
      %vm1155 = vcmp.eq.s32.totalorder %v1152, 1
      %v1156 = vlaneseq
      %v1157 = vshrl.u32 %v1156, 7
      %v1158 = vsub.s32 0, %v1157
      %v1159 = vrot.slane %v1137, %v1158
      %v1160 = vsel %vm1153, %v1159, %v314
      %v1161 = vsel %vm1154, %v1159, %v315
      %v1162 = vsel %vm1155, %v1159, %v316
      %v1163 = vstv %s384
      %vm1164 = vcmp.eq.s32.totalorder %v1143, %v1163
      %vm1165 = vcmp.eq.s32.totalorder %v1144, %v1163
      %vm1166 = vcmp.eq.s32.totalorder %v1145, %v1163
      %v1167 = vsel %vm1164, 1, 0
      %v1168 = vsel %vm1165, 1, 0
      %v1169 = vsel %vm1166, 1, 0
      %vm1170 = vcmp.eq.s32.totalorder %v1167, 1
      %vm1171 = vcmp.eq.s32.totalorder %v1168, 1
      %vm1172 = vcmp.eq.s32.totalorder %v1169, 1
      %v1173 = vlaneseq
      %v1174 = vshrl.u32 %v1173, 7
      %v1175 = vsub.s32 1, %v1174
      %v1176 = vrot.slane %v1137, %v1175
      %v1177 = vsel %vm1170, %v1176, %v1160
      %v1178 = vsel %vm1171, %v1176, %v1161
      %v1179 = vsel %vm1172, %v1176, %v1162
      %v1180 = vstv %s388
      %vm1181 = vcmp.eq.s32.totalorder %v1143, %v1180
      %vm1182 = vcmp.eq.s32.totalorder %v1144, %v1180
      %vm1183 = vcmp.eq.s32.totalorder %v1145, %v1180
      %v1184 = vsel %vm1181, 1, 0
      %v1185 = vsel %vm1182, 1, 0
      %v1186 = vsel %vm1183, 1, 0
      %vm1187 = vcmp.eq.s32.totalorder %v1184, 1
      %vm1188 = vcmp.eq.s32.totalorder %v1185, 1
      %vm1189 = vcmp.eq.s32.totalorder %v1186, 1
      %v1190 = vlaneseq
      %v1191 = vshrl.u32 %v1190, 7
      %v1192 = vsub.s32 2, %v1191
      %v1193 = vrot.slane %v1137, %v1192
      %v1194 = vsel %vm1187, %v1193, %v1177
      %v1195 = vsel %vm1188, %v1193, %v1178
      %v1196 = vsel %vm1189, %v1193, %v1179
      %v1197 = vstv %s392
      %vm1198 = vcmp.eq.s32.totalorder %v1143, %v1197
      %vm1199 = vcmp.eq.s32.totalorder %v1144, %v1197
      %vm1200 = vcmp.eq.s32.totalorder %v1145, %v1197
      %v1201 = vsel %vm1198, 1, 0
      %v1202 = vsel %vm1199, 1, 0
      %v1203 = vsel %vm1200, 1, 0
      %vm1204 = vcmp.eq.s32.totalorder %v1201, 1
      %vm1205 = vcmp.eq.s32.totalorder %v1202, 1
      %vm1206 = vcmp.eq.s32.totalorder %v1203, 1
      %v1207 = vlaneseq
      %v1208 = vshrl.u32 %v1207, 7
      %v1209 = vsub.s32 3, %v1208
      %v1210 = vrot.slane %v1137, %v1209
      %v1211 = vsel %vm1204, %v1210, %v1194
      %v1212 = vsel %vm1205, %v1210, %v1195
      %v1213 = vsel %vm1206, %v1210, %v1196
      %1214 = vst.msk [vmem:[%s312] sm:$0xff] %vm319, %v1211
      %1215 = vst.msk [vmem:[%s312 + $0x8] sm:$0xff] %vm319, %v1212
      %1216 = vst.msk [vmem:[%s312 + $0x10] sm:$0x1] %vm326, %v1213
      %p1217 = scmp.lt.s32.totalorder %s26, 1
      %s1218 = scalar_select %p1217, %s26, 1
      %s1219 = smul.addr %s1218, 3
      %s1220 = smul.addr %s1219, 8
      %s1221 = scalar_lea.vmem %s9, %s1220
      // Predicated region
      $region53: #{glca_forward.1} parent=51 // pred_check
        %p1222 = pneg %p217
      $region54: #{glca_forward.1} parent=51 // pred_check_branch
        %1224 = sbr.rel (%p1222) target = $region56
      $region55: #{glca_forward.1} parent=51 // pred_region
        _
      $region56: #{glca_forward.1} parent=51 // pred_fallthru
        _
    $region52: #{glca_forward.1} parent=5 // pred_fallthru
      _
    %p1225 = scmp.le.s32.totalorder 2, %s21
    // Predicated region
    $region57: #{glca_forward.1} parent=5 // pred_check
      %p1226 = pneg %p1225
    $region58: #{glca_forward.1} parent=5 // pred_check_branch
      %1228 = sbr.rel (%p1226) target = $region60
    $region59: #{glca_forward.1} parent=5 // pred_region
      %s1229 = ssub.s32 %s21, 2
      // Predicated region
      $region61: #{glca_forward.1} parent=59 // pred_check
        %p1230 = pneg %p223
      $region62: #{glca_forward.1} parent=59 // pred_check_branch
        %1232 = sbr.rel (%p1230) target = $region64
      $region63: #{glca_forward.1} parent=59 // pred_region
        %p1233 = scmp.lt.s32.totalorder %s27, 1
        %s1234 = scalar_select %p1233, %s27, 1
        %s1235 = smul.addr %s1234, 3
        %s1236 = smul.addr %s1235, 8
        %s1237 = scalar_lea.vmem %s9, %s1236
      $region64: #{glca_forward.1} parent=59 // pred_fallthru
        _
    $region60: #{glca_forward.1} parent=5 // pred_fallthru
      _
  $region6: #{glca_forward.1} parent=0 // loop_footer
    %s25 = sadd.s32 1, %s21
  $region7: #{glca_forward.1} parent=0 // loop_footer_branch
    %20 = sbr.rel target = $region3
  $region8: #{glca_forward.1} parent=0 // loop_exit
    _

</llo_original>
